<compile_context>
chip_gen: v7x
topology: tpu7x:2x2x1
jax: 0.10.0
libtpu: 0.0.40
codegen_flags: <defaults>
</compile_context>

<pallas_src>
import functools

import numpy as np
import jax
import jax.numpy as jnp
from jax.experimental import pallas as pl
from jax.experimental.pallas import tpu as pltpu

# Older JAX releases named this TPUCompilerParams; keep a soft fallback.
_CompilerParams = getattr(pltpu, "CompilerParams", None) or getattr(
    pltpu, "TPUCompilerParams")


# ----------------------------------------------------------------------------
# Deterministic filter initialization (tap counts match farras / qshift_a = 10)
# ----------------------------------------------------------------------------
_H0A1 = np.array([0.0, -0.08838834764832, 0.08838834764832, 0.69587998903400,
                  0.69587998903400, 0.08838834764832, -0.08838834764832,
                  0.01122679215254, 0.01122679215254, 0.0], dtype=np.float64)
_H1A1 = np.array([0.0, -0.01122679215254, 0.01122679215254, 0.08838834764832,
                  0.08838834764832, -0.69587998903400, 0.69587998903400,
                  -0.08838834764832, -0.08838834764832, 0.0], dtype=np.float64)
_H0B1 = np.array([0.01122679215254, 0.01122679215254, -0.08838834764832,
                  0.08838834764832, 0.69587998903400, 0.69587998903400,
                  0.08838834764832, -0.08838834764832, 0.0, 0.0], dtype=np.float64)
_H1B1 = np.array([0.0, 0.0, -0.08838834764832, -0.08838834764832,
                  0.69587998903400, -0.69587998903400, 0.08838834764832,
                  0.08838834764832, 0.01122679215254, -0.01122679215254],
                 dtype=np.float64)

_H0A = np.array([0.03516384, 0.0, -0.08832942, 0.23389032, 0.76027237,
                 0.58751830, 0.0, -0.11430184, 0.0, 0.0], dtype=np.float64)
_H1A = np.array([0.0, 0.0, -0.11430184, 0.0, 0.58751830, -0.76027237,
                 0.23389032, 0.08832942, 0.0, -0.03516384], dtype=np.float64)
_H0B = _H0A[::-1].copy()
_H1B = _H1A[::-1].copy()

LEVEL1_FILTS = (_H0A1, _H0B1, _H1A1, _H1B1)   # h0a1, h0b1, h1a1, h1b1
QSHIFT_FILTS = (_H0A, _H0B, _H1A, _H1B)       # h0a,  h0b,  h1a,  h1b


# ----------------------------------------------------------------------------
# Host-side glue: symmetric-padding index map and padding-folded band matrices
# ----------------------------------------------------------------------------
def _reflect(x, minx, maxx):
    rng = maxx - minx
    rng_by_2 = 2 * rng
    mod = np.fmod(x - minx, rng_by_2)
    normed_mod = np.where(mod < 0, mod + rng_by_2, mod)
    out = np.where(normed_mod >= rng, rng_by_2 - normed_mod, normed_mod) + minx
    return out


def _symm_pad_idx(length, pad_l, pad_r):
    xe = _reflect(np.arange(-pad_l, length + pad_r, dtype=np.float64),
                  -0.5, length - 0.5)
    return xe.astype(np.int32)


def _pad_amounts(n, filt_len):
    outsize = (n + filt_len - 1) // 2          # pywt.dwt_coeff_len, symmetric
    p = 2 * (outsize - 1) - n + filt_len
    return outsize, p // 2, (p + 1) // 2


def _band_matrix_folded(h0, h1, n):
    """Stride-2 analysis band matrix with symmetric padding folded in.

    Returns Mf (n, 2*O) float64 s.t. for a length-n signal x, (x @ Mf)[:O] is
    the lowpass subband and [O:] the highpass, identical to symmetric-padding
    x and correlating with the reversed filters at stride 2
    (pytorch_wavelets afb1d, mode='symmetric')."""
    h0 = np.asarray(h0, dtype=np.float64).ravel()
    h1 = np.asarray(h1, dtype=np.float64).ravel()
    L = h0.size
    O, pad_l, pad_r = _pad_amounts(n, L)
    P = n + pad_l + pad_r
    h0r, h1r = h0[::-1], h1[::-1]
    M = np.zeros((P, 2 * O), dtype=np.float64)
    for o in range(O):
        M[2 * o:2 * o + L, o] = h0r
        M[2 * o:2 * o + L, O + o] = h1r
    # fold the reflection: padded row j is original row xe[j]  ->  Mf = R^T M
    xe = _symm_pad_idx(n, pad_l, pad_r)
    Mf = np.zeros((n, 2 * O), dtype=np.float64)
    np.add.at(Mf, xe, M)
    return Mf, O


# ----------------------------------------------------------------------------
# Generation-aware VMEM parameters and tile choice
# ----------------------------------------------------------------------------
def _vmem_params():
    cap = 64 * 1024 * 1024                     # conservative fallback (v7x)
    try:
        cap = int(pltpu.get_tpu_info().vmem_capacity_bytes)
    except Exception:
        pass
    vmem_limit = min(int(cap * 0.75), 100 * 1024 * 1024)   # 48 MiB v7x / 96 MiB v5e,v6e
    vmem_budget = min(int(cap * 0.30), 40 * 1024 * 1024)   # working-set budget
    return vmem_limit, vmem_budget


def _pick_tb(group, n_mat, H, W, NR, NC, itemsize, vmem_budget, max_tb=32):
    """Images per grid step: a divisor of `group` (a step never mixes filter
    sets).  Preference order: (a) fits the double-buffered VMEM budget,
    (b) lane-dense output block (tb*NC >= 128), (c) an even total grid-step
    count >= 2 so both v7x TensorCores get work, (d) tb*NC >= 256 for the
    256-wide v6e/v7x MXU, (e) largest tb."""
    cands = [d for d in range(min(group, max_tb), 0, -1) if group % d == 0]

    def fits(tb):
        x_blk = H * tb * W * itemsize
        mct_blk = NR * H * itemsize
        mr_blk = (tb * W) * (tb * NC) * itemsize
        out_blk = NR * tb * NC * 4
        interm = NR * tb * W * (4 + itemsize)   # f32 col-pass result + cast copy
        return 2 * (x_blk + mct_blk + mr_blk + out_blk) + interm <= vmem_budget

    valid = [tb for tb in cands if fits(tb)] or [1]

    def steps(tb):
        return n_mat * (group // tb)

    dense = [tb for tb in valid if tb * NC >= 128] or valid
    pref = [tb for tb in dense if steps(tb) >= 2 and steps(tb) % 2 == 0]
    if pref:
        wide = [tb for tb in pref if tb * NC >= 256]
        return (wide or pref)[0]
    return dense[0]


# ----------------------------------------------------------------------------
# Pallas kernel: batched separable 2-D analysis filter bank (lane-dense slab)
# ----------------------------------------------------------------------------
def _afb2d_kernel(x_ref, mct_ref, mrbd_ref, o_ref):
    # x_ref   : (1, H, tb*W)      tb images side-by-side along lanes
    # mct_ref : (1, NR, H)        transposed column band matrix (lo ; hi [...])
    # mrbd_ref: (1, tb*W, tb*NC)  block-diagonal row band matrix
    # o_ref   : (1, NR, tb*NC)    lane-dense output block (>=128 lanes)
    t = jnp.dot(mct_ref[0], x_ref[0], preferred_element_type=jnp.float32)
    t = t.astype(mrbd_ref.dtype)               # no-op in the f32 path
    y = jnp.dot(t, mrbd_ref[0], preferred_element_type=jnp.float32)
    o_ref[0] = y.astype(o_ref.dtype)


def _afb2d_batched(x_imgs, mr_all, mct_all, group, operand_dtype=jnp.bfloat16):
    """y[i] = mct_all[k] @ x_imgs[i] @ mr_all[k],  k = i // group.

    x_imgs : (n_img, H, W) f32 (device).
    mr_all : (n_mat, W, NC) float64 numpy -- padding-folded row band matrices.
    mct_all: (n_mat, NR, H) float64 numpy -- transposed column band matrices.
    Returns (n_img, NR, NC) float32.
    """
    n_img, H, W = x_imgs.shape
    n_mat, W2, NC = mr_all.shape
    _, NR, H2 = mct_all.shape
    assert W2 == W and H2 == H and n_img == n_mat * group

    itemsize = np.dtype(operand_dtype).itemsize
    vmem_limit, vmem_budget = _vmem_params()
    tb = _pick_tb(group, n_mat, H, W, NR, NC, itemsize, vmem_budget)
    spm = group // tb                           # grid steps per matrix set
    n_steps = n_mat * spm

    # Slab layout: one fused XLA cast+transpose; per grid step the tb images
    # sit side-by-side along the lane dimension.  No row padding is needed:
    # every block below covers the full last-two dims of its array.
    x_slab = x_imgs.reshape(n_steps, tb, H, W).transpose(0, 2, 1, 3)
    x_slab = x_slab.reshape(n_steps, H, tb * W).astype(operand_dtype)

    # Block-diagonal row band matrices: one (W, NC) block per image in a tile
    # (off-diagonal zeros are wasted MXU FLOPs, negligible at these sizes --
    # see the band-aware tiling TODO at the top for large images).
    mr_bd = np.zeros((n_mat, tb * W, tb * NC), dtype=np.float64)
    for k in range(n_mat):
        for b in range(tb):
            mr_bd[k, b * W:(b + 1) * W, b * NC:(b + 1) * NC] = mr_all[k]
    mr_bd = jnp.asarray(mr_bd, dtype=operand_dtype)
    mct = jnp.asarray(mct_all, dtype=operand_dtype)

    flops = 2 * n_steps * (NR * H * tb * W + NR * (tb * W) * (tb * NC))
    bytes_accessed = (itemsize * (n_img * H * W
                                  + n_mat * (NR * H + (tb * W) * (tb * NC)))
                      + 4 * n_steps * NR * tb * NC)

    out = pl.pallas_call(
        _afb2d_kernel,
        out_shape=jax.ShapeDtypeStruct((n_steps, NR, tb * NC), jnp.float32),
        grid=(n_mat, spm),
        in_specs=[
            # TODO(synk): bump to pipeline_mode=pl.Buffered(3) if an xprof
            # trace shows the x DMA exposed (large tb, small W).
            pl.BlockSpec((1, H, tb * W), lambda k, t: (k * spm + t, 0, 0)),
            pl.BlockSpec((1, NR, H), lambda k, t: (k, 0, 0)),
            pl.BlockSpec((1, tb * W, tb * NC), lambda k, t: (k, 0, 0)),
        ],
        out_specs=pl.BlockSpec((1, NR, tb * NC),
                               lambda k, t: (k * spm + t, 0, 0)),
        compiler_params=_CompilerParams(
            dimension_semantics=("parallel", "parallel"),
            vmem_limit_bytes=vmem_limit),
        cost_estimate=pl.CostEstimate(flops=flops, transcendentals=0,
                                      bytes_accessed=bytes_accessed),
    )(x_slab, mct, mr_bd)

    # Undo the slab layout in XLA (cheap at these sizes).
    out = out.reshape(n_steps, NR, tb, NC).transpose(0, 2, 1, 3)
    return out.reshape(n_img, NR, NC)


def _split_quadrants(blk, oh, ow):
    """blk: (N, C, 2*oh, 2*ow) -> (ll, highs (N, C, 3, oh, ow)) with the
    pytorch_wavelets band order [(row-lo,col-hi), (row-hi,col-lo), (hi,hi)]."""
    ll = blk[:, :, :oh, :ow]
    band0 = blk[:, :, oh:, :ow]      # col-highpass, row-lowpass
    band1 = blk[:, :, :oh, ow:]      # col-lowpass,  row-highpass
    band2 = blk[:, :, oh:, ow:]      # both highpass
    highs = jnp.stack([band0, band1, band2], axis=2)
    return ll, highs


# ----------------------------------------------------------------------------
# DTCWTForward2.forward
# ----------------------------------------------------------------------------
def dtcwt_forward2(x, level1_filts=LEVEL1_FILTS, qshift_filts=QSHIFT_FILTS,
                   J=3, operand_dtype=jnp.bfloat16):
    h0a1, h0b1, h1a1, h1b1 = level1_filts
    h0a, h0b, h1a, h1b = qshift_filts

    N, C, H, W = x.shape
    B = N * C
    x = x.astype(jnp.float32)      # the x/2 is folded into the level-1 matrices

    combos = [(0, 0), (0, 1), (1, 0), (1, 1)]     # (m = col tree, n = row tree)
    lvl1 = [(h0a1, h1a1), (h0b1, h1b1)]
    lvl2 = [(h0a, h1a), (h0b, h1b)]

    w = [[[None, None], [None, None]] for _ in range(J)]
    lls = [[None, None], [None, None]]

    # ---- level 0: all four trees fused into a single kernel -----------------
    mr_a, ow0 = _band_matrix_folded(*lvl1[0], W)
    mr_b, _ = _band_matrix_folded(*lvl1[1], W)
    mc_a, oh0 = _band_matrix_folded(*lvl1[0], H)
    mc_b, _ = _band_matrix_folded(*lvl1[1], H)
    mr_cat = 0.5 * np.concatenate([mr_a, mr_b], axis=1)      # x/2 folded in
    mct_cat = np.concatenate([mc_a.T, mc_b.T], axis=0)       # (4*oh0, H)

    out0 = _afb2d_batched(x.reshape(B, H, W), mr_cat[None], mct_cat[None],
                          group=B, operand_dtype=operand_dtype)
    out0 = out0.reshape(N, C, 4 * oh0, 4 * ow0)
    for (m, n) in combos:
        blk = out0[:, :, m * 2 * oh0:(m + 1) * 2 * oh0,
                         n * 2 * ow0:(n + 1) * 2 * ow0]
        ll, highs = _split_quadrants(blk, oh0, ow0)
        w[0][m][n] = highs
        lls[m][n] = ll

    # ---- levels 1..J-1: four per-tree LLs batched into one kernel per level -
    for j in range(1, J):
        Hj, Wj = lls[0][0].shape[-2:]
        mr_qa, owj = _band_matrix_folded(*lvl2[0], Wj)
        mr_qb, _ = _band_matrix_folded(*lvl2[1], Wj)
        mc_qa, ohj = _band_matrix_folded(*lvl2[0], Hj)
        mc_qb, _ = _band_matrix_folded(*lvl2[1], Hj)
        mr_by_tree = [mr_qa, mr_qb]
        mct_by_tree = [mc_qa.T, mc_qb.T]
        mr_all = np.stack([mr_by_tree[n] for (m, n) in combos], axis=0)
        mct_all = np.stack([mct_by_tree[m] for (m, n) in combos], axis=0)

        ll_stack = jnp.concatenate(
            [lls[m][n].reshape(B, Hj, Wj) for (m, n) in combos], axis=0)
        out = _afb2d_batched(ll_stack, mr_all, mct_all, group=B,
                             operand_dtype=operand_dtype)
        out = out.reshape(4, N, C, 2 * ohj, 2 * owj)
        for idx, (m, n) in enumerate(combos):
            ll, highs = _split_quadrants(out[idx], ohj, owj)
            w[j][m][n] = highs
            lls[m][n] = ll

    # ---- pm() band-mixing epilogue (XLA; VPU-trivial) ------------------------
    sq2 = np.float32(np.sqrt(2.0))

    def pm(a, b):
        return (a + b) / sq2, (a - b) / sq2

    yh = []
    for j in range(J):
        deg75r, deg105i = pm(w[j][0][0][:, :, 1], w[j][1][1][:, :, 1])
        deg105r, deg75i = pm(w[j][0][1][:, :, 1], w[j][1][0][:, :, 1])
        deg15r, deg165i = pm(w[j][0][0][:, :, 0], w[j][1][1][:, :, 0])
        deg165r, deg15i = pm(w[j][0][1][:, :, 0], w[j][1][0][:, :, 0])
        deg135r, deg45i = pm(w[j][0][0][:, :, 2], w[j][1][1][:, :, 2])
        deg45r, deg135i = pm(w[j][0][1][:, :, 2], w[j][1][0][:, :, 2])
        yhr = jnp.stack((deg15r, deg45r, deg75r, deg105r, deg135r, deg165r), axis=1)
        yhi = jnp.stack((deg15i, deg45i, deg75i, deg105i, deg135i, deg165i), axis=1)
        yh.append(jnp.stack((yhr, yhi), axis=-1))   # (N, 6, C, Hj, Wj, 2)

    return lls, yh


# ----------------------------------------------------------------------------
# Float64 numpy reference (unfused, explicit symmetric padding) for validation
# ----------------------------------------------------------------------------
def _afb1d_np(x, h0, h1, axis):
    h0 = np.asarray(h0, np.float64).ravel()
    h1 = np.asarray(h1, np.float64).ravel()
    L = h0.size
    n = x.shape[axis]
    O, pad_l, pad_r = _pad_amounts(n, L)
    xe = _symm_pad_idx(n, pad_l, pad_r)
    xpm = np.moveaxis(np.take(x, xe, axis=axis), axis, -1)
    h0r, h1r = h0[::-1], h1[::-1]
    lo = np.zeros(xpm.shape[:-1] + (O,), np.float64)
    hi = np.zeros_like(lo)
    for o in range(O):
        seg = xpm[..., 2 * o:2 * o + L]
        lo[..., o] = seg @ h0r
        hi[..., o] = seg @ h1r
    return np.moveaxis(lo, -1, axis), np.moveaxis(hi, -1, axis)


def _afb2d_np(x, h0c, h1c, h0r, h1r):
    lo, hi = _afb1d_np(x, h0r, h1r, axis=3)
    ll, b0 = _afb1d_np(lo, h0c, h1c, axis=2)
    b1, b2 = _afb1d_np(hi, h0c, h1c, axis=2)
    return ll, np.stack([b0, b1, b2], axis=2)


def dtcwt_forward2_ref(x_np, J=3):
    x = np.asarray(x_np, np.float64) / 2.0
    lvl1 = [(_H0A1, _H1A1), (_H0B1, _H1B1)]
    lvl2 = [(_H0A, _H1A), (_H0B, _H1B)]
    w = [[[None, None], [None, None]] for _ in range(J)]
    lows = [[None, None], [None, None]]
    for m in range(2):
        for n in range(2):
            ll, w[0][m][n] = _afb2d_np(x, *lvl1[m], *lvl1[n])
            for j in range(1, J):
                ll, w[j][m][n] = _afb2d_np(ll, *lvl2[m], *lvl2[n])
            lows[m][n] = ll
    sq2 = np.sqrt(2.0)
    pm = lambda a, b: ((a + b) / sq2, (a - b) / sq2)
    yh = []
    for j in range(J):
        deg75r, deg105i = pm(w[j][0][0][:, :, 1], w[j][1][1][:, :, 1])
        deg105r, deg75i = pm(w[j][0][1][:, :, 1], w[j][1][0][:, :, 1])
        deg15r, deg165i = pm(w[j][0][0][:, :, 0], w[j][1][1][:, :, 0])
        deg165r, deg15i = pm(w[j][0][1][:, :, 0], w[j][1][0][:, :, 0])
        deg135r, deg45i = pm(w[j][0][0][:, :, 2], w[j][1][1][:, :, 2])
        deg45r, deg135i = pm(w[j][0][1][:, :, 2], w[j][1][0][:, :, 2])
        yhr = np.stack((deg15r, deg45r, deg75r, deg105r, deg135r, deg165r), axis=1)
        yhi = np.stack((deg15i, deg45i, deg75i, deg105i, deg135i, deg165i), axis=1)
        yh.append(np.stack((yhr, yhi), axis=-1))
    return lows, yh


if __name__ == "__main__":
    key = jax.random.PRNGKey(0)
    x = jax.random.normal(key, (2, 4, 16, 16), dtype=jnp.float32)

    lows_ref, yh_ref = dtcwt_forward2_ref(np.asarray(x), J=3)

    def check(lows, yh, rtol, atol):
        # shape sanity (J=3, 16 -> 12 -> 10 -> 9 with 10-tap symmetric filters)
        assert lows[0][0].shape == (2, 4, 9, 9)
        assert yh[0].shape == (2, 6, 4, 12, 12, 2)
        assert yh[1].shape == (2, 6, 4, 10, 10, 2)
        assert yh[2].shape == (2, 6, 4, 9, 9, 2)
        for m in range(2):
            for n in range(2):
                np.testing.assert_allclose(np.asarray(lows[m][n]),
                                           lows_ref[m][n], rtol=rtol, atol=atol)
        for j in range(3):
            np.testing.assert_allclose(np.asarray(yh[j]), yh_ref[j],
                                       rtol=rtol, atol=atol)

    # default path: bf16 operands, f32 MXU accumulation (looser tolerance
    # because of bf16 operand quantization over 6 chained matmuls)
    fwd_bf16 = jax.jit(functools.partial(dtcwt_forward2, J=3))
    lows, yh = fwd_bf16(x)
    jax.block_until_ready(lows)
    jax.block_until_ready(yh)
    check(lows, yh, rtol=1e-1, atol=1e-1)

    # f32 operand path (tighter tolerance vs the float64 reference)
    fwd_f32 = jax.jit(functools.partial(dtcwt_forward2, J=3,
                                        operand_dtype=jnp.float32))
    lows32, yh32 = fwd_f32(x)
    jax.block_until_ready(lows32)
    jax.block_until_ready(yh32)
    check(lows32, yh32, rtol=5e-2, atol=5e-2)

    print("KERNEL_OK")
</pallas_src>

<mosaic_0001>
module attributes {stable_mosaic.version = 11 : i64} {
  func.func @_afb2d_kernel(%arg0: i32, %arg1: i32, %arg2: memref<1x16x64xbf16, #tpu.memory_space<vmem>>, %arg3: memref<1x48x16xbf16, #tpu.memory_space<vmem>>, %arg4: memref<1x64x192xbf16, #tpu.memory_space<vmem>>, %arg5: memref<1x48x192xf32, #tpu.memory_space<vmem>>) attributes {dimension_semantics = [#tpu.dimension_semantics<parallel>, #tpu.dimension_semantics<parallel>], iteration_bounds = array<i64: 1, 2>, scalar_prefetch = 0 : i64, scratch_operands = 0 : i64, tpu.core_type = #tpu.core_type<tc>, window_params = [{transform_indices = @transform_0, window_bounds = array<i64: 1, 16, 64>}, {transform_indices = @transform_1, window_bounds = array<i64: 1, 48, 16>}, {transform_indices = @transform_2, window_bounds = array<i64: 1, 64, 192>}, {transform_indices = @transform_3, window_bounds = array<i64: 1, 48, 192>}]} {
    %c0 = arith.constant 0 : index
    %c0_0 = arith.constant 0 : index
    %c0_1 = arith.constant 0 : index
    %0 = vector.load %arg3[%c0, %c0_0, %c0_1] : memref<1x48x16xbf16, #tpu.memory_space<vmem>>, vector<1x48x16xbf16>
    %1 = vector.shape_cast %0 : vector<1x48x16xbf16> to vector<48x16xbf16>
    %c0_2 = arith.constant 0 : index
    %c0_3 = arith.constant 0 : index
    %c0_4 = arith.constant 0 : index
    %2 = vector.load %arg2[%c0_2, %c0_3, %c0_4] : memref<1x16x64xbf16, #tpu.memory_space<vmem>>, vector<1x16x64xbf16>
    %3 = vector.shape_cast %2 : vector<1x16x64xbf16> to vector<16x64xbf16>
    %cst = arith.constant dense<0.000000e+00> : vector<48x64xf32>
    %4 = tpu.matmul %1, %3, %cst {dimension_numbers = #tpu.dot_dimension_numbers<[1], [0], [0], [1], [0, 0, 1, 1], [], []>} : vector<48x16xbf16>, vector<16x64xbf16>, vector<48x64xf32> -> vector<48x64xf32>
    %5 = arith.truncf %4 : vector<48x64xf32> to vector<48x64xbf16>
    %c0_5 = arith.constant 0 : index
    %c0_6 = arith.constant 0 : index
    %c0_7 = arith.constant 0 : index
    %6 = vector.load %arg4[%c0_5, %c0_6, %c0_7] : memref<1x64x192xbf16, #tpu.memory_space<vmem>>, vector<1x64x192xbf16>
    %7 = vector.shape_cast %6 : vector<1x64x192xbf16> to vector<64x192xbf16>
    %cst_8 = arith.constant dense<0.000000e+00> : vector<48x192xf32>
    %8 = tpu.matmul %5, %7, %cst_8 {dimension_numbers = #tpu.dot_dimension_numbers<[1], [0], [0], [1], [0, 0, 1, 1], [], []>} : vector<48x64xbf16>, vector<64x192xbf16>, vector<48x192xf32> -> vector<48x192xf32>
    %c0_9 = arith.constant 0 : index
    %c0_10 = arith.constant 0 : index
    %c0_11 = arith.constant 0 : index
    %9 = vector.load %arg5[%c0_9, %c0_10, %c0_11] : memref<1x48x192xf32, #tpu.memory_space<vmem>>, vector<1x48x192xf32>
    %10 = vector.shape_cast %9 : vector<1x48x192xf32> to vector<48x192xf32>
    %11 = vector.shape_cast %8 : vector<48x192xf32> to vector<1x48x192xf32>
    tpu.vector_store %arg5[%c0_9, %c0_10, %c0_11], %11 {strides = array<i32>} : memref<1x48x192xf32, #tpu.memory_space<vmem>>, vector<1x48x192xf32>,
    return
  }
  func.func @transform_0(%arg0: i32, %arg1: i32) -> (i32, i32, i32) {
    %c2_i32 = arith.constant 2 : i32
    %0 = arith.muli %arg0, %c2_i32 : i32
    %1 = arith.addi %0, %arg1 : i32
    %c0_i32 = arith.constant 0 : i32
    %c0_i32_0 = arith.constant 0 : i32
    %c0_i32_1 = arith.constant 0 : i32
    return %1, %c0_i32, %c0_i32_0 : i32, i32, i32
  }
  func.func @transform_1(%arg0: i32, %arg1: i32) -> (i32, i32, i32) {
    %c0_i32 = arith.constant 0 : i32
    %c0_i32_0 = arith.constant 0 : i32
    %c0_i32_1 = arith.constant 0 : i32
    return %arg0, %c0_i32, %c0_i32_0 : i32, i32, i32
  }
  func.func @transform_2(%arg0: i32, %arg1: i32) -> (i32, i32, i32) {
    %c0_i32 = arith.constant 0 : i32
    %c0_i32_0 = arith.constant 0 : i32
    %c0_i32_1 = arith.constant 0 : i32
    return %arg0, %c0_i32, %c0_i32_0 : i32, i32, i32
  }
  func.func @transform_3(%arg0: i32, %arg1: i32) -> (i32, i32, i32) {
    %c2_i32 = arith.constant 2 : i32
    %0 = arith.muli %arg0, %c2_i32 : i32
    %1 = arith.addi %0, %arg1 : i32
    %c0_i32 = arith.constant 0 : i32
    %c0_i32_0 = arith.constant 0 : i32
    %c0_i32_1 = arith.constant 0 : i32
    return %1, %c0_i32, %c0_i32_0 : i32, i32, i32
  }
}

module attributes {stable_mosaic.version = 11 : i64} {
  func.func @_afb2d_kernel(%arg0: i32, %arg1: i32, %arg2: memref<1x12x96xbf16, #tpu.memory_space<vmem>>, %arg3: memref<1x20x12xbf16, #tpu.memory_space<vmem>>, %arg4: memref<1x96x160xbf16, #tpu.memory_space<vmem>>, %arg5: memref<1x20x160xf32, #tpu.memory_space<vmem>>) attributes {dimension_semantics = [#tpu.dimension_semantics<parallel>, #tpu.dimension_semantics<parallel>], iteration_bounds = array<i64: 4, 1>, scalar_prefetch = 0 : i64, scratch_operands = 0 : i64, tpu.core_type = #tpu.core_type<tc>, window_params = [{transform_indices = @transform_0, window_bounds = array<i64: 1, 12, 96>}, {transform_indices = @transform_1, window_bounds = array<i64: 1, 20, 12>}, {transform_indices = @transform_2, window_bounds = array<i64: 1, 96, 160>}, {transform_indices = @transform_3, window_bounds = array<i64: 1, 20, 160>}]} {
    %c0 = arith.constant 0 : index
    %c0_0 = arith.constant 0 : index
    %c0_1 = arith.constant 0 : index
    %0 = vector.load %arg3[%c0, %c0_0, %c0_1] : memref<1x20x12xbf16, #tpu.memory_space<vmem>>, vector<1x20x12xbf16>
    %1 = vector.shape_cast %0 : vector<1x20x12xbf16> to vector<20x12xbf16>
    %c0_2 = arith.constant 0 : index
    %c0_3 = arith.constant 0 : index
    %c0_4 = arith.constant 0 : index
    %2 = vector.load %arg2[%c0_2, %c0_3, %c0_4] : memref<1x12x96xbf16, #tpu.memory_space<vmem>>, vector<1x12x96xbf16>
    %3 = vector.shape_cast %2 : vector<1x12x96xbf16> to vector<12x96xbf16>
    %cst = arith.constant dense<0.000000e+00> : vector<20x96xf32>
    %4 = tpu.matmul %1, %3, %cst {dimension_numbers = #tpu.dot_dimension_numbers<[1], [0], [0], [1], [0, 0, 1, 1], [], []>} : vector<20x12xbf16>, vector<12x96xbf16>, vector<20x96xf32> -> vector<20x96xf32>
    %5 = arith.truncf %4 : vector<20x96xf32> to vector<20x96xbf16>
    %c0_5 = arith.constant 0 : index
    %c0_6 = arith.constant 0 : index
    %c0_7 = arith.constant 0 : index
    %6 = vector.load %arg4[%c0_5, %c0_6, %c0_7] : memref<1x96x160xbf16, #tpu.memory_space<vmem>>, vector<1x96x160xbf16>
    %7 = vector.shape_cast %6 : vector<1x96x160xbf16> to vector<96x160xbf16>
    %cst_8 = arith.constant dense<0.000000e+00> : vector<20x160xf32>
    %8 = tpu.matmul %5, %7, %cst_8 {dimension_numbers = #tpu.dot_dimension_numbers<[1], [0], [0], [1], [0, 0, 1, 1], [], []>} : vector<20x96xbf16>, vector<96x160xbf16>, vector<20x160xf32> -> vector<20x160xf32>
    %c0_9 = arith.constant 0 : index
    %c0_10 = arith.constant 0 : index
    %c0_11 = arith.constant 0 : index
    %9 = vector.load %arg5[%c0_9, %c0_10, %c0_11] : memref<1x20x160xf32, #tpu.memory_space<vmem>>, vector<1x20x160xf32>
    %10 = vector.shape_cast %9 : vector<1x20x160xf32> to vector<20x160xf32>
    %11 = vector.shape_cast %8 : vector<20x160xf32> to vector<1x20x160xf32>
    tpu.vector_store %arg5[%c0_9, %c0_10, %c0_11], %11 {strides = array<i32>} : memref<1x20x160xf32, #tpu.memory_space<vmem>>, vector<1x20x160xf32>,
    return
  }
  func.func @transform_0(%arg0: i32, %arg1: i32) -> (i32, i32, i32) {
    %c1_i32 = arith.constant 1 : i32
    %0 = arith.muli %arg0, %c1_i32 : i32
    %1 = arith.addi %0, %arg1 : i32
    %c0_i32 = arith.constant 0 : i32
    %c0_i32_0 = arith.constant 0 : i32
    %c0_i32_1 = arith.constant 0 : i32
    return %1, %c0_i32, %c0_i32_0 : i32, i32, i32
  }
  func.func @transform_1(%arg0: i32, %arg1: i32) -> (i32, i32, i32) {
    %c0_i32 = arith.constant 0 : i32
    %c0_i32_0 = arith.constant 0 : i32
    %c0_i32_1 = arith.constant 0 : i32
    return %arg0, %c0_i32, %c0_i32_0 : i32, i32, i32
  }
  func.func @transform_2(%arg0: i32, %arg1: i32) -> (i32, i32, i32) {
    %c0_i32 = arith.constant 0 : i32
    %c0_i32_0 = arith.constant 0 : i32
    %c0_i32_1 = arith.constant 0 : i32
    return %arg0, %c0_i32, %c0_i32_0 : i32, i32, i32
  }
  func.func @transform_3(%arg0: i32, %arg1: i32) -> (i32, i32, i32) {
    %c1_i32 = arith.constant 1 : i32
    %0 = arith.muli %arg0, %c1_i32 : i32
    %1 = arith.addi %0, %arg1 : i32
    %c0_i32 = arith.constant 0 : i32
    %c0_i32_0 = arith.constant 0 : i32
    %c0_i32_1 = arith.constant 0 : i32
    return %1, %c0_i32, %c0_i32_0 : i32, i32, i32
  }
}

module attributes {stable_mosaic.version = 11 : i64} {
  func.func @_afb2d_kernel(%arg0: i32, %arg1: i32, %arg2: memref<1x10x80xbf16, #tpu.memory_space<vmem>>, %arg3: memref<1x18x10xbf16, #tpu.memory_space<vmem>>, %arg4: memref<1x80x144xbf16, #tpu.memory_space<vmem>>, %arg5: memref<1x18x144xf32, #tpu.memory_space<vmem>>) attributes {dimension_semantics = [#tpu.dimension_semantics<parallel>, #tpu.dimension_semantics<parallel>], iteration_bounds = array<i64: 4, 1>, scalar_prefetch = 0 : i64, scratch_operands = 0 : i64, tpu.core_type = #tpu.core_type<tc>, window_params = [{transform_indices = @transform_0, window_bounds = array<i64: 1, 10, 80>}, {transform_indices = @transform_1, window_bounds = array<i64: 1, 18, 10>}, {transform_indices = @transform_2, window_bounds = array<i64: 1, 80, 144>}, {transform_indices = @transform_3, window_bounds = array<i64: 1, 18, 144>}]} {
    %c0 = arith.constant 0 : index
    %c0_0 = arith.constant 0 : index
    %c0_1 = arith.constant 0 : index
    %0 = vector.load %arg3[%c0, %c0_0, %c0_1] : memref<1x18x10xbf16, #tpu.memory_space<vmem>>, vector<1x18x10xbf16>
    %1 = vector.shape_cast %0 : vector<1x18x10xbf16> to vector<18x10xbf16>
    %c0_2 = arith.constant 0 : index
    %c0_3 = arith.constant 0 : index
    %c0_4 = arith.constant 0 : index
    %2 = vector.load %arg2[%c0_2, %c0_3, %c0_4] : memref<1x10x80xbf16, #tpu.memory_space<vmem>>, vector<1x10x80xbf16>
    %3 = vector.shape_cast %2 : vector<1x10x80xbf16> to vector<10x80xbf16>
    %cst = arith.constant dense<0.000000e+00> : vector<18x80xf32>
    %4 = tpu.matmul %1, %3, %cst {dimension_numbers = #tpu.dot_dimension_numbers<[1], [0], [0], [1], [0, 0, 1, 1], [], []>} : vector<18x10xbf16>, vector<10x80xbf16>, vector<18x80xf32> -> vector<18x80xf32>
    %5 = arith.truncf %4 : vector<18x80xf32> to vector<18x80xbf16>
    %c0_5 = arith.constant 0 : index
    %c0_6 = arith.constant 0 : index
    %c0_7 = arith.constant 0 : index
    %6 = vector.load %arg4[%c0_5, %c0_6, %c0_7] : memref<1x80x144xbf16, #tpu.memory_space<vmem>>, vector<1x80x144xbf16>
    %7 = vector.shape_cast %6 : vector<1x80x144xbf16> to vector<80x144xbf16>
    %cst_8 = arith.constant dense<0.000000e+00> : vector<18x144xf32>
    %8 = tpu.matmul %5, %7, %cst_8 {dimension_numbers = #tpu.dot_dimension_numbers<[1], [0], [0], [1], [0, 0, 1, 1], [], []>} : vector<18x80xbf16>, vector<80x144xbf16>, vector<18x144xf32> -> vector<18x144xf32>
    %c0_9 = arith.constant 0 : index
    %c0_10 = arith.constant 0 : index
    %c0_11 = arith.constant 0 : index
    %9 = vector.load %arg5[%c0_9, %c0_10, %c0_11] : memref<1x18x144xf32, #tpu.memory_space<vmem>>, vector<1x18x144xf32>
    %10 = vector.shape_cast %9 : vector<1x18x144xf32> to vector<18x144xf32>
    %11 = vector.shape_cast %8 : vector<18x144xf32> to vector<1x18x144xf32>
    tpu.vector_store %arg5[%c0_9, %c0_10, %c0_11], %11 {strides = array<i32>} : memref<1x18x144xf32, #tpu.memory_space<vmem>>, vector<1x18x144xf32>,
    return
  }
  func.func @transform_0(%arg0: i32, %arg1: i32) -> (i32, i32, i32) {
    %c1_i32 = arith.constant 1 : i32
    %0 = arith.muli %arg0, %c1_i32 : i32
    %1 = arith.addi %0, %arg1 : i32
    %c0_i32 = arith.constant 0 : i32
    %c0_i32_0 = arith.constant 0 : i32
    %c0_i32_1 = arith.constant 0 : i32
    return %1, %c0_i32, %c0_i32_0 : i32, i32, i32
  }
  func.func @transform_1(%arg0: i32, %arg1: i32) -> (i32, i32, i32) {
    %c0_i32 = arith.constant 0 : i32
    %c0_i32_0 = arith.constant 0 : i32
    %c0_i32_1 = arith.constant 0 : i32
    return %arg0, %c0_i32, %c0_i32_0 : i32, i32, i32
  }
  func.func @transform_2(%arg0: i32, %arg1: i32) -> (i32, i32, i32) {
    %c0_i32 = arith.constant 0 : i32
    %c0_i32_0 = arith.constant 0 : i32
    %c0_i32_1 = arith.constant 0 : i32
    return %arg0, %c0_i32, %c0_i32_0 : i32, i32, i32
  }
  func.func @transform_3(%arg0: i32, %arg1: i32) -> (i32, i32, i32) {
    %c1_i32 = arith.constant 1 : i32
    %0 = arith.muli %arg0, %c1_i32 : i32
    %1 = arith.addi %0, %arg1 : i32
    %c0_i32 = arith.constant 0 : i32
    %c0_i32_0 = arith.constant 0 : i32
    %c0_i32_1 = arith.constant 0 : i32
    return %1, %c0_i32, %c0_i32_0 : i32, i32, i32
  }
}

</mosaic_0001>

<llo_original>
// kernel: dtcwt_forward2.3
$region0: #{dtcwt_forward2.3}
  #allocation0 [shape = 'u32[]', space=smem, size = 0x4, offset = 0x4, fixed_abs, tag = 'smem constant byte address 0x4 - core index']
  #allocation1 [shape = 'u32[144,128]{1,0:T(1,128)}', space=vmem, size = 0x12000, scoped, tag = 'internal scratch']
  %s0 = inlined_call_operand.vmem [shape: bf16[2,16,64], index: 0, kind: input, shape index: {}]
  %s1 = inlined_call_operand.vmem [shape: bf16[1,48,16], index: 1, kind: input, shape index: {}]
  %s2 = inlined_call_operand.vmem [shape: bf16[1,64,192], index: 2, kind: input, shape index: {}]
  %s3 = inlined_call_operand.vmem [shape: f32[2,48,192], index: 3, kind: output, shape index: {}]
  %s4 = sld [smem:[#allocation0]]
  $region45: #{dtcwt_forward2.3} parent=0
    _
  %s6 = ssub.s32 1, %s4
  %s7 = scalar_select 0, %s6, %s4
  loop: start=0, step=1, limit=4
  $region2: #{dtcwt_forward2.3} parent=0 // loop_pre_header
    _
  $region3: #{dtcwt_forward2.3} parent=0 // loop_header
    %s9 = sphi 0, %s13
    %p10 = scmp.ge.s32.totalorder %s9, 4
    %s16 = sphi 0, %s28
    %s17 = sphi 0, %s24
    %s18 = sphi 0, %s16
    %s19 = sphi 0, %s17
    %s20 = sphi 0, %s18
    %s21 = sphi 0, %s19
    %s35 = sphi 0, %s37
    %s38 = sphi 0, %s35
    %s39 = sphi 0, %s38
    %s55 = sphi 0, %s39
    %s61 = sphi 0, %s63
    %s64 = sphi 0, %s61
    %s65 = sphi 0, %s64
    %s81 = sphi 0, %s65
    %s87 = sphi 0, %s89
    %s90 = sphi 0, %s87
    %s91 = sphi 0, %s90
    %s107 = sphi 0, %s91
    %s117 = sphi 0, %s119
    %s120 = sphi 0, %s117
    %s121 = sphi 0, %s120
    %s137 = sphi 0, %s121
  $region4: #{dtcwt_forward2.3} parent=0 // loop_header_branch
    %12 = sbr.rel (%p10) target = $region8
  $region5: #{dtcwt_forward2.3} parent=0 // loop_body
    %s14 = ssub.s32 %s9, 1
    %s15 = ssub.s32 %s9, 2
    %s22 = sadd.s32 1, %s17
    %p23 = scmp.ge.s32.totalorder %s22, 2
    %s24 = scalar_select %p23, 0, %s22
    %s25 = sadd.s32 1, %s16
    %s26 = scalar_select %p23, %s25, %s16
    %p27 = scmp.ge.s32.totalorder %s26, 1
    %s28 = scalar_select %p27, 0, %s26
    %s29 = smul.u32 %s16, 2
    %s30 = sadd.s32 %s29, %s17
    %s31 = smul.u32 %s28, 2
    %s32 = sadd.s32 %s31, %s24
    %s33 = ssub.s32 %s30, %s32
    %p34 = scmp.eq.s32.totalorder %s33, 0
    %s36 = sadd.s32 %s35, 1
    %s37 = scalar_select %p34, %s35, %s36
    %p40 = pneg %p34
    %p41 = scmp.eq.s32.totalorder %s9, 1
    %p42 = por %p40, %p41
    %p43 = scmp.ne.s32.totalorder %s35, %s38
    %p44 = scmp.eq.s32.totalorder %s9, 0
    %p45 = por %p43, %p44
    %p46 = scmp.ne.s32.totalorder %s35, %s38
    %p47 = scmp.eq.s32.totalorder %s14, 1
    %p48 = por %p46, %p47
    %p49 = scmp.ne.s32.totalorder %s38, %s39
    %p50 = scmp.eq.s32.totalorder %s14, 0
    %p51 = por %p49, %p50
    %p52 = scmp.ne.s32.totalorder %s38, %s39
    %p53 = scmp.eq.s32.totalorder %s15, 1
    %p54 = por %p52, %p53
    %p56 = scmp.ne.s32.totalorder %s39, %s55
    %p57 = scmp.eq.s32.totalorder %s15, 0
    %p58 = por %p56, %p57
    %s59 = ssub.s32 %s16, %s28
    %p60 = scmp.eq.s32.totalorder %s59, 0
    %s62 = sadd.s32 %s61, 1
    %s63 = scalar_select %p60, %s61, %s62
    %p66 = pneg %p60
    %p67 = scmp.eq.s32.totalorder %s9, 1
    %p68 = por %p66, %p67
    %p69 = scmp.ne.s32.totalorder %s61, %s64
    %p70 = scmp.eq.s32.totalorder %s9, 0
    %p71 = por %p69, %p70
    %p72 = scmp.ne.s32.totalorder %s61, %s64
    %p73 = scmp.eq.s32.totalorder %s14, 1
    %p74 = por %p72, %p73
    %p75 = scmp.ne.s32.totalorder %s64, %s65
    %p76 = scmp.eq.s32.totalorder %s14, 0
    %p77 = por %p75, %p76
    %p78 = scmp.ne.s32.totalorder %s64, %s65
    %p79 = scmp.eq.s32.totalorder %s15, 1
    %p80 = por %p78, %p79
    %p82 = scmp.ne.s32.totalorder %s65, %s81
    %p83 = scmp.eq.s32.totalorder %s15, 0
    %p84 = por %p82, %p83
    %s85 = ssub.s32 %s16, %s28
    %p86 = scmp.eq.s32.totalorder %s85, 0
    %s88 = sadd.s32 %s87, 1
    %s89 = scalar_select %p86, %s87, %s88
    %p92 = pneg %p86
    %p93 = scmp.eq.s32.totalorder %s9, 1
    %p94 = por %p92, %p93
    %p95 = scmp.ne.s32.totalorder %s87, %s90
    %p96 = scmp.eq.s32.totalorder %s9, 0
    %p97 = por %p95, %p96
    %p98 = scmp.ne.s32.totalorder %s87, %s90
    %p99 = scmp.eq.s32.totalorder %s14, 1
    %p100 = por %p98, %p99
    %p101 = scmp.ne.s32.totalorder %s90, %s91
    %p102 = scmp.eq.s32.totalorder %s14, 0
    %p103 = por %p101, %p102
    %p104 = scmp.ne.s32.totalorder %s90, %s91
    %p105 = scmp.eq.s32.totalorder %s15, 1
    %p106 = por %p104, %p105
    %p108 = scmp.ne.s32.totalorder %s91, %s107
    %p109 = scmp.eq.s32.totalorder %s15, 0
    %p110 = por %p108, %p109
    %s111 = smul.u32 %s16, 2
    %s112 = sadd.s32 %s111, %s17
    %s113 = smul.u32 %s28, 2
    %s114 = sadd.s32 %s113, %s24
    %s115 = ssub.s32 %s112, %s114
    %p116 = scmp.eq.s32.totalorder %s115, 0
    %s118 = sadd.s32 %s117, 1
    %s119 = scalar_select %p116, %s117, %s118
    %p122 = pneg %p116
    %p123 = scmp.eq.s32.totalorder %s9, 1
    %p124 = por %p122, %p123
    %p125 = scmp.ne.s32.totalorder %s117, %s120
    %p126 = scmp.eq.s32.totalorder %s9, 0
    %p127 = por %p125, %p126
    %p128 = scmp.ne.s32.totalorder %s117, %s120
    %p129 = scmp.eq.s32.totalorder %s14, 1
    %p130 = por %p128, %p129
    %p131 = scmp.ne.s32.totalorder %s120, %s121
    %p132 = scmp.eq.s32.totalorder %s14, 0
    %p133 = por %p131, %p132
    %p134 = scmp.ne.s32.totalorder %s120, %s121
    %p135 = scmp.eq.s32.totalorder %s15, 1
    %p136 = por %p134, %p135
    %p138 = scmp.ne.s32.totalorder %s121, %s137
    %p139 = scmp.eq.s32.totalorder %s15, 0
    %p140 = por %p138, %p139
    %p141 = scmp.le.s32.totalorder 1, %s9
    %p142 = scmp.lt.s32.totalorder %s9, 3
    %p143 = pnand %p141, %p142
    %p144 = pneg %p143
    // Predicated region
    $region9: #{dtcwt_forward2.3} parent=5 // pred_check
      _
    $region10: #{dtcwt_forward2.3} parent=5 // pred_check_branch
      %146 = sbr.rel (%p143) target = $region12
    $region11: #{dtcwt_forward2.3} parent=5 // pred_region
      %s147 = ssub.s32 %s9, 1
      // Predicated region
      $region13: #{dtcwt_forward2.3} parent=11 // pred_check
        %p148 = pneg %p77
      $region14: #{dtcwt_forward2.3} parent=11 // pred_check_branch
        %150 = sbr.rel (%p148) target = $region16
      $region15: #{dtcwt_forward2.3} parent=11 // pred_region
        %p151 = scmp.lt.s32.totalorder %s18, 0
        %s152 = scalar_select %p151, %s18, 0
        %s153 = smul.addr %s152, 6
        %s154 = smul.addr %s153, 4
        %s155 = scalar_lea.vmem %s1, %s154
      $region16: #{dtcwt_forward2.3} parent=11 // pred_fallthru
        _
      // Predicated region
      $region17: #{dtcwt_forward2.3} parent=11 // pred_check
        %p156 = pneg %p103
      $region18: #{dtcwt_forward2.3} parent=11 // pred_check_branch
        %158 = sbr.rel (%p156) target = $region20
      $region19: #{dtcwt_forward2.3} parent=11 // pred_region
        %p159 = scmp.lt.s32.totalorder %s18, 0
        %s160 = scalar_select %p159, %s18, 0
        %s161 = smul.addr %s160, 16
        %s162 = smul.addr %s161, 4
        %s163 = scalar_lea.vmem %s2, %s162
      $region20: #{dtcwt_forward2.3} parent=11 // pred_fallthru
        _
    $region12: #{dtcwt_forward2.3} parent=5 // pred_fallthru
      _
    %p164 = scmp.lt.s32.totalorder %s9, 2
    // Predicated region
    $region21: #{dtcwt_forward2.3} parent=5 // pred_check
      %p165 = pneg %p164
    $region22: #{dtcwt_forward2.3} parent=5 // pred_check_branch
      %167 = sbr.rel (%p165) target = $region24
    $region23: #{dtcwt_forward2.3} parent=5 // pred_region
      // Predicated region
      $region25: #{dtcwt_forward2.3} parent=23 // pred_check
        %p168 = pneg %p45
      $region26: #{dtcwt_forward2.3} parent=23 // pred_check_branch
        %170 = sbr.rel (%p168) target = $region28
      $region27: #{dtcwt_forward2.3} parent=23 // pred_region
        %s171 = smul.u32 %s16, 2
        %s172 = sadd.s32 %s171, %s17
        %p173 = scmp.lt.s32.totalorder %s172, 1
        %s174 = scalar_select %p173, %s172, 1
        %s175 = smul.addr %s174, 2
        %s176 = smul.addr %s175, 4
        %s177 = scalar_lea.vmem %s0, %s176
        %s178 = smul.u32 %s16, 2
        %s179 = sadd.s32 %s178, %s17
      $region28: #{dtcwt_forward2.3} parent=23 // pred_fallthru
        _
    $region24: #{dtcwt_forward2.3} parent=5 // pred_fallthru
      _
    %p180 = scmp.le.s32.totalorder 1, %s9
    %p181 = scmp.lt.s32.totalorder %s9, 3
    %p182 = pnand %p180, %p181
    %p183 = pneg %p182
    // Predicated region
    $region29: #{dtcwt_forward2.3} parent=5 // pred_check
      _
    $region30: #{dtcwt_forward2.3} parent=5 // pred_check_branch
      %185 = sbr.rel (%p182) target = $region32
    $region31: #{dtcwt_forward2.3} parent=5 // pred_region
      %s186 = ssub.s32 %s9, 1
      %s187 = smul.u32 %s18, 2
      %s188 = sadd.s32 %s187, %s19
      %p189 = scmp.lt.s32.totalorder %s188, 1
      %s190 = scalar_select %p189, %s188, 1
      %s191 = smul.addr %s190, 2
      %s192 = smul.addr %s191, 4
      %s193 = scalar_lea.vmem %s0, %s192
      %p194 = pneg %p51
      %p195 = pneg %p48
      %p196 = scmp.lt.s32.totalorder %s18, 0
      %s197 = scalar_select %p196, %s18, 0
      %s198 = smul.addr %s197, 6
      %s199 = smul.addr %s198, 4
      %s200 = scalar_lea.vmem %s1, %s199
      %p201 = pneg %p77
      %p202 = pneg %p74
      %p203 = scmp.lt.s32.totalorder %s18, 0
      %s204 = scalar_select %p203, %s18, 0
      %s205 = smul.addr %s204, 16
      %s206 = smul.addr %s205, 4
      %s207 = scalar_lea.vmem %s2, %s206
      %p208 = pneg %p103
      %p209 = pneg %p100
      %p210 = pneg %p133
      %p211 = pneg %p130
      %s212 = smul.u32 %s18, 2
      %s213 = sadd.s32 %s212, %s19
      %p214 = scmp.lt.s32.totalorder %s213, 1
      %s215 = scalar_select %p214, %s213, 1
      %s216 = smul.addr %s215, 12
      %s217 = smul.addr %s216, 8
      %s218 = scalar_lea.vmem %s3, %s217
      %s219 = smul.u32 %s18, 2
      %s220 = sadd.s32 %s219, %s19
      %p221 = scmp.lt.s32.totalorder %s220, 1
      %s222 = scalar_select %p221, %s220, 1
      %s223 = smul.addr %s222, 2
      %s224 = smul.addr %s223, 4
      %s225 = scalar_lea.vmem %s0, %s224
      %s226 = smul.u32 %s18, 2
      %s227 = sadd.s32 %s226, %s19
      %p228 = scmp.lt.s32.totalorder %s18, 0
      %s229 = scalar_select %p228, %s18, 0
      %s230 = smul.addr %s229, 6
      %s231 = smul.addr %s230, 4
      %s232 = scalar_lea.vmem %s1, %s231
      %p233 = scmp.lt.s32.totalorder %s18, 0
      %s234 = scalar_select %p233, %s18, 0
      %s235 = smul.addr %s234, 16
      %s236 = smul.addr %s235, 4
      %s237 = scalar_lea.vmem %s2, %s236
      %s238 = smul.u32 %s18, 2
      %s239 = sadd.s32 %s238, %s19
      %p240 = scmp.lt.s32.totalorder %s239, 1
      %s241 = scalar_select %p240, %s239, 1
      %s242 = smul.addr %s241, 12
      %s243 = smul.addr %s242, 8
      %s244 = scalar_lea.vmem %s3, %s243
      %s245 = smul.u32 %s18, 2
      %s246 = sadd.s32 %s245, %s19
      %v248 = vld [vmem:[%s232] sm:$0xf]
      %v249 = vld [vmem:[%s232 + $0x4] sm:$0xf]
      %v250 = vld [vmem:[%s232 + $0x8] sm:$0xf]
      %v251 = vld [vmem:[%s232 + $0xc] sm:$0xf]
      %v252 = vld [vmem:[%s232 + $0x10] sm:$0xf]
      %v253 = vld [vmem:[%s232 + $0x14] sm:$0xf]
      %v254 = vld [vmem:[%s225] sm:$0xf]
      %v255 = vld [vmem:[%s225 + $0x4] sm:$0xf]
      %v262 = vunpack.c.l.b16 %v248
      %v263 = vunpack.c.l.b16 %v249
      %v264 = vunpack.c.l.b16 %v250
      %v265 = vunpack.c.l.b16 %v251
      %v266 = vunpack.c.l.b16 %v252
      %v267 = vunpack.c.l.b16 %v253
      %v268 = vpack.c.b16 %v263, %v262
      %v269 = vpack.c.b16 %v265, %v264
      %v270 = vpack.c.b16 %v267, %v266
      %v273 = vunpack.c.l.b16 %v254
      %v274 = vunpack.c.l.b16 %v255
      %v275 = vpack.c.b16 %v274, %v273
      %vm277 = vcmask 130048
      %v279 = vsel %vm277, %v268, 0
      %v282 = vsel %vm277, %v269, 0
      %v285 = vsel %vm277, %v270, 0
      %287 = vmatprep.subr.bf16.mxu0 0
      %288 = vmatpush1.bf16.msra.mxu0 %v275
      %289 = vmatprep.subr.bf16.mxu0 0
      %290 = vmatpush1.bf16.msra.mxu0 0
      %291 = vmatprep.subr.bf16.mxu0 0
      %292 = vmatpush1.bf16.msra.mxu0 0
      %293 = vmatprep.subr.bf16.mxu0 0
      %294 = vmatpush1.bf16.msra.mxu0 0
      %295 = vmatprep.subr.bf16.mxu0 0
      %296 = vmatpush1.bf16.msra.mxu0 0
      %297 = vmatprep.subr.bf16.mxu0 0
      %298 = vmatpush1.bf16.msra.mxu0 0
      %299 = vmatprep.subr.bf16.mxu0 0
      %300 = vmatpush1.bf16.msra.mxu0 0
      %301 = vmatprep.subr.bf16.mxu0 0
      %302 = vmatpush1.bf16.msra.mxu0 0
      %303 = vmatprep.subr.bf16.mxu0 0
      %304 = vmatpush1.bf16.msra.mxu0 0
      %305 = vmatprep.subr.bf16.mxu0 0
      %306 = vmatpush1.bf16.msra.mxu0 0
      %307 = vmatprep.subr.bf16.mxu0 0
      %308 = vmatpush1.bf16.msra.mxu0 0
      %309 = vmatprep.subr.bf16.mxu0 0
      %310 = vmatpush1.bf16.msra.mxu0 0
      %311 = vmatprep.subr.bf16.mxu0 0
      %312 = vmatpush1.bf16.msra.mxu0 0
      %313 = vmatprep.subr.bf16.mxu0 0
      %314 = vmatpush1.bf16.msra.mxu0 0
      %315 = vmatprep.subr.bf16.mxu0 0
      %316 = vmatpush1.bf16.msra.mxu0 0
      %317 = vmatprep.subr.bf16.mxu0 0
      %318 = vmatpush1.bf16.msra.mxu0 0
      %319 = vmatprep.mubr.bf16.mxu0 0
      %320 = vmatmul.mubr.bf16.gmra.mrb[0].mxu0 %v279
      %v321 = vpop.f32.mrb[0].mxu0
      %v322 = vadd.f32 0.0, %v321
      %v323 = vpop.f32.mrb[0].mxu0
      %v324 = vpop.f32.mrb[0].mxu0
      %v325 = vadd.f32 0.0, %v324
      %v326 = vpop.f32.mrb[0].mxu0
      %327 = vmatprep.mubr.bf16.mxu0 0
      %328 = vmatmul.mubr.bf16.gmra.mrb[0].mxu0 %v282
      %v329 = vpop.f32.mrb[0].mxu0
      %v330 = vadd.f32 0.0, %v329
      %v331 = vpop.f32.mrb[0].mxu0
      %v332 = vpop.f32.mrb[0].mxu0
      %v333 = vadd.f32 0.0, %v332
      %v334 = vpop.f32.mrb[0].mxu0
      %335 = vmatprep.mubr.bf16.mxu0 0
      %336 = vmatmul.mubr.bf16.gmra.mrb[0].mxu0 %v285
      %v337 = vpop.f32.mrb[0].mxu0
      %v338 = vadd.f32 0.0, %v337
      %v339 = vpop.f32.mrb[0].mxu0
      %v340 = vpop.f32.mrb[0].mxu0
      %v341 = vadd.f32 0.0, %v340
      %v342 = vpop.f32.mrb[0].mxu0
      %343 = vdwg.mxu0
      %v344 = vpack.c.bf16 %v325, %v322
      %v345 = vpack.c.bf16 %v333, %v330
      %v346 = vpack.c.bf16 %v341, %v338
      %v347 = vld [vmem:[%s237] sm:$0xff]
      %v348 = vld [vmem:[%s237 + $0x8] sm:$0xff]
      %v349 = vld [vmem:[%s237 + $0x10] sm:$0xff]
      %v350 = vld [vmem:[%s237 + $0x18] sm:$0xff]
      %v351 = vld [vmem:[%s237 + $0x20] sm:$0xff]
      %v352 = vld [vmem:[%s237 + $0x28] sm:$0xff]
      %v353 = vld [vmem:[%s237 + $0x30] sm:$0xff]
      %v354 = vld [vmem:[%s237 + $0x38] sm:$0xff]
      %v363 = vunpack.c.l.b16 %v347
      %v364 = vunpack.c.h.b16 %v347
      %v365 = vunpack.c.l.b16 %v348
      %v366 = vunpack.c.h.b16 %v348
      %v367 = vunpack.c.l.b16 %v349
      %v368 = vunpack.c.h.b16 %v349
      %v369 = vunpack.c.l.b16 %v350
      %v370 = vunpack.c.h.b16 %v350
      %v371 = vunpack.c.l.b16 %v351
      %v372 = vunpack.c.h.b16 %v351
      %v373 = vunpack.c.l.b16 %v352
      %v374 = vunpack.c.h.b16 %v352
      %v375 = vunpack.c.l.b16 %v353
      %v376 = vunpack.c.h.b16 %v353
      %v377 = vunpack.c.l.b16 %v354
      %v378 = vunpack.c.h.b16 %v354
      %v379 = vpack.c.b16 %v365, %v363
      %v380 = vpack.c.b16 %v366, %v364
      %v381 = vpack.c.b16 %v369, %v367
      %v382 = vpack.c.b16 %v370, %v368
      %v383 = vpack.c.b16 %v373, %v371
      %v384 = vpack.c.b16 %v374, %v372
      %v385 = vpack.c.b16 %v377, %v375
      %v386 = vpack.c.b16 %v378, %v376
      %vm395 = vcmask 523264
      %v397 = vsel %vm395, %v344, 0
      %v400 = vsel %vm395, %v345, 0
      %v403 = vsel %vm395, %v346, 0
      %405 = vmatprep.subr.bf16.mxu0 %v380
      %406 = vmatpush1.bf16.msra.mxu0 %v379
      %407 = vmatprep.subr.bf16.mxu0 %v382
      %408 = vmatpush1.bf16.msra.mxu0 %v381
      %409 = vmatprep.subr.bf16.mxu0 %v384
      %410 = vmatpush1.bf16.msra.mxu0 %v383
      %411 = vmatprep.subr.bf16.mxu0 %v386
      %412 = vmatpush1.bf16.msra.mxu0 %v385
      %413 = vmatprep.subr.bf16.mxu0 0
      %414 = vmatpush1.bf16.msra.mxu0 0
      %415 = vmatprep.subr.bf16.mxu0 0
      %416 = vmatpush1.bf16.msra.mxu0 0
      %417 = vmatprep.subr.bf16.mxu0 0
      %418 = vmatpush1.bf16.msra.mxu0 0
      %419 = vmatprep.subr.bf16.mxu0 0
      %420 = vmatpush1.bf16.msra.mxu0 0
      %421 = vmatprep.subr.bf16.mxu0 0
      %422 = vmatpush1.bf16.msra.mxu0 0
      %423 = vmatprep.subr.bf16.mxu0 0
      %424 = vmatpush1.bf16.msra.mxu0 0
      %425 = vmatprep.subr.bf16.mxu0 0
      %426 = vmatpush1.bf16.msra.mxu0 0
      %427 = vmatprep.subr.bf16.mxu0 0
      %428 = vmatpush1.bf16.msra.mxu0 0
      %429 = vmatprep.subr.bf16.mxu0 0
      %430 = vmatpush1.bf16.msra.mxu0 0
      %431 = vmatprep.subr.bf16.mxu0 0
      %432 = vmatpush1.bf16.msra.mxu0 0
      %433 = vmatprep.subr.bf16.mxu0 0
      %434 = vmatpush1.bf16.msra.mxu0 0
      %435 = vmatprep.subr.bf16.mxu0 0
      %436 = vmatpush1.bf16.msra.mxu0 0
      %437 = vmatprep.mubr.bf16.mxu0 0
      %438 = vmatmul.mubr.bf16.gmra.mrb[0].mxu0 %v397
      %v439 = vpop.f32.mrb[0].mxu0
      %v440 = vadd.f32 0.0, %v439
      %v441 = vpop.f32.mrb[0].mxu0
      %v442 = vadd.f32 0.0, %v441
      %v443 = vpop.f32.mrb[0].mxu0
      %v444 = vadd.f32 0.0, %v443
      %v445 = vpop.f32.mrb[0].mxu0
      %v446 = vadd.f32 0.0, %v445
      %447 = vmatprep.mubr.bf16.mxu0 0
      %448 = vmatmul.mubr.bf16.gmra.mrb[0].mxu0 %v400
      %v449 = vpop.f32.mrb[0].mxu0
      %v450 = vadd.f32 0.0, %v449
      %v451 = vpop.f32.mrb[0].mxu0
      %v452 = vadd.f32 0.0, %v451
      %v453 = vpop.f32.mrb[0].mxu0
      %v454 = vadd.f32 0.0, %v453
      %v455 = vpop.f32.mrb[0].mxu0
      %v456 = vadd.f32 0.0, %v455
      %457 = vmatprep.mubr.bf16.mxu0 0
      %458 = vmatmul.mubr.bf16.gmra.mrb[0].mxu0 %v403
      %v459 = vpop.f32.mrb[0].mxu0
      %v460 = vadd.f32 0.0, %v459
      %v461 = vpop.f32.mrb[0].mxu0
      %v462 = vadd.f32 0.0, %v461
      %v463 = vpop.f32.mrb[0].mxu0
      %v464 = vadd.f32 0.0, %v463
      %v465 = vpop.f32.mrb[0].mxu0
      %v466 = vadd.f32 0.0, %v465
      %467 = vdwg.mxu0
      %468 = vst [vmem:[%s244] sm:$0xff] %v440
      %469 = vst.msk [vmem:[%s244 + $0x8] sm:$0xff] %vm395, %v442
      %470 = vst [vmem:[%s244 + $0x10] sm:$0xff] %v444
      %471 = vst.msk [vmem:[%s244 + $0x18] sm:$0xff] %vm395, %v446
      %472 = vst [vmem:[%s244 + $0x20] sm:$0xff] %v450
      %473 = vst.msk [vmem:[%s244 + $0x28] sm:$0xff] %vm395, %v452
      %474 = vst [vmem:[%s244 + $0x30] sm:$0xff] %v454
      %475 = vst.msk [vmem:[%s244 + $0x38] sm:$0xff] %vm395, %v456
      %476 = vst [vmem:[%s244 + $0x40] sm:$0xff] %v460
      %477 = vst.msk [vmem:[%s244 + $0x48] sm:$0xff] %vm395, %v462
      %478 = vst [vmem:[%s244 + $0x50] sm:$0xff] %v464
      %479 = vst.msk [vmem:[%s244 + $0x58] sm:$0xff] %vm395, %v466
      %s480 = smul.u32 %s18, 2
      %s481 = sadd.s32 %s480, %s19
      %p482 = scmp.lt.s32.totalorder %s481, 1
      %s483 = scalar_select %p482, %s481, 1
      %s484 = smul.addr %s483, 12
      %s485 = smul.addr %s484, 8
      %s486 = scalar_lea.vmem %s3, %s485
      // Predicated region
      $region33: #{dtcwt_forward2.3} parent=31 // pred_check
        %p487 = pneg %p130
      $region34: #{dtcwt_forward2.3} parent=31 // pred_check_branch
        %489 = sbr.rel (%p487) target = $region36
      $region35: #{dtcwt_forward2.3} parent=31 // pred_region
        %s490 = smul.u32 %s18, 2
        %s491 = sadd.s32 %s490, %s19
      $region36: #{dtcwt_forward2.3} parent=31 // pred_fallthru
        _
    $region32: #{dtcwt_forward2.3} parent=5 // pred_fallthru
      _
    %p492 = scmp.le.s32.totalorder 2, %s9
    // Predicated region
    $region37: #{dtcwt_forward2.3} parent=5 // pred_check
      %p493 = pneg %p492
    $region38: #{dtcwt_forward2.3} parent=5 // pred_check_branch
      %495 = sbr.rel (%p493) target = $region40
    $region39: #{dtcwt_forward2.3} parent=5 // pred_region
      %s496 = ssub.s32 %s9, 2
      // Predicated region
      $region41: #{dtcwt_forward2.3} parent=39 // pred_check
        %p497 = pneg %p136
      $region42: #{dtcwt_forward2.3} parent=39 // pred_check_branch
        %499 = sbr.rel (%p497) target = $region44
      $region43: #{dtcwt_forward2.3} parent=39 // pred_region
        %s500 = smul.u32 %s20, 2
        %s501 = sadd.s32 %s500, %s21
        %p502 = scmp.lt.s32.totalorder %s501, 1
        %s503 = scalar_select %p502, %s501, 1
        %s504 = smul.addr %s503, 12
        %s505 = smul.addr %s504, 8
        %s506 = scalar_lea.vmem %s3, %s505
      $region44: #{dtcwt_forward2.3} parent=39 // pred_fallthru
        _
    $region40: #{dtcwt_forward2.3} parent=5 // pred_fallthru
      _
  $region6: #{dtcwt_forward2.3} parent=0 // loop_footer
    %s13 = sadd.s32 1, %s9
  $region7: #{dtcwt_forward2.3} parent=0 // loop_footer_branch
    %8 = sbr.rel target = $region3
  $region8: #{dtcwt_forward2.3} parent=0 // loop_exit
    _

// kernel: dtcwt_forward2.4
$region0: #{dtcwt_forward2.4}
  #allocation0 [shape = 'u32[]', space=smem, size = 0x4, offset = 0x4, fixed_abs, tag = 'smem constant byte address 0x4 - core index']
  #allocation1 [shape = 'u32[144,128]{1,0:T(1,128)}', space=vmem, size = 0x12000, scoped, tag = 'internal scratch']
  %s0 = inlined_call_operand.vmem [shape: bf16[4,12,96], index: 0, kind: input, shape index: {}]
  %s1 = inlined_call_operand.vmem [shape: bf16[4,20,12], index: 1, kind: input, shape index: {}]
  %s2 = inlined_call_operand.vmem [shape: bf16[4,96,160], index: 2, kind: input, shape index: {}]
  %s3 = inlined_call_operand.vmem [shape: f32[4,20,160], index: 3, kind: output, shape index: {}]
  %s4 = sld [smem:[#allocation0]]
  $region45: #{dtcwt_forward2.4} parent=0
    _
  %s6 = ssub.s32 1, %s4
  %s7 = scalar_select 0, %s6, %s4
  loop: start=0, step=1, limit=6
  $region2: #{dtcwt_forward2.4} parent=0 // loop_pre_header
    _
  $region3: #{dtcwt_forward2.4} parent=0 // loop_header
    %s9 = sphi 0, %s13
    %p10 = scmp.ge.s32.totalorder %s9, 6
    %s16 = sphi 0, %s28
    %s17 = sphi 0, %s24
    %s18 = sphi 0, %s16
    %s19 = sphi 0, %s17
    %s20 = sphi 0, %s18
    %s21 = sphi 0, %s19
    %s33 = sphi 0, %s35
    %s36 = sphi 0, %s33
    %s37 = sphi 0, %s36
    %s53 = sphi 0, %s37
    %s59 = sphi 0, %s61
    %s62 = sphi 0, %s59
    %s63 = sphi 0, %s62
    %s79 = sphi 0, %s63
    %s85 = sphi 0, %s87
    %s88 = sphi 0, %s85
    %s89 = sphi 0, %s88
    %s105 = sphi 0, %s89
    %s113 = sphi 0, %s115
    %s116 = sphi 0, %s113
    %s117 = sphi 0, %s116
    %s133 = sphi 0, %s117
  $region4: #{dtcwt_forward2.4} parent=0 // loop_header_branch
    %12 = sbr.rel (%p10) target = $region8
  $region5: #{dtcwt_forward2.4} parent=0 // loop_body
    %s14 = ssub.s32 %s9, 1
    %s15 = ssub.s32 %s9, 2
    %s22 = sadd.s32 1, %s17
    %p23 = scmp.ge.s32.totalorder %s22, 1
    %s24 = scalar_select %p23, 0, %s22
    %s25 = sadd.s32 1, %s16
    %s26 = scalar_select %p23, %s25, %s16
    %p27 = scmp.ge.s32.totalorder %s26, 4
    %s28 = scalar_select %p27, 0, %s26
    %s29 = sadd.s32 %s16, %s17
    %s30 = sadd.s32 %s28, %s24
    %s31 = ssub.s32 %s29, %s30
    %p32 = scmp.eq.s32.totalorder %s31, 0
    %s34 = sadd.s32 %s33, 1
    %s35 = scalar_select %p32, %s33, %s34
    %p38 = pneg %p32
    %p39 = scmp.eq.s32.totalorder %s9, 3
    %p40 = por %p38, %p39
    %p41 = scmp.ne.s32.totalorder %s33, %s36
    %p42 = scmp.eq.s32.totalorder %s9, 0
    %p43 = por %p41, %p42
    %p44 = scmp.ne.s32.totalorder %s33, %s36
    %p45 = scmp.eq.s32.totalorder %s14, 3
    %p46 = por %p44, %p45
    %p47 = scmp.ne.s32.totalorder %s36, %s37
    %p48 = scmp.eq.s32.totalorder %s14, 0
    %p49 = por %p47, %p48
    %p50 = scmp.ne.s32.totalorder %s36, %s37
    %p51 = scmp.eq.s32.totalorder %s15, 3
    %p52 = por %p50, %p51
    %p54 = scmp.ne.s32.totalorder %s37, %s53
    %p55 = scmp.eq.s32.totalorder %s15, 0
    %p56 = por %p54, %p55
    %s57 = ssub.s32 %s16, %s28
    %p58 = scmp.eq.s32.totalorder %s57, 0
    %s60 = sadd.s32 %s59, 1
    %s61 = scalar_select %p58, %s59, %s60
    %p64 = pneg %p58
    %p65 = scmp.eq.s32.totalorder %s9, 3
    %p66 = por %p64, %p65
    %p67 = scmp.ne.s32.totalorder %s59, %s62
    %p68 = scmp.eq.s32.totalorder %s9, 0
    %p69 = por %p67, %p68
    %p70 = scmp.ne.s32.totalorder %s59, %s62
    %p71 = scmp.eq.s32.totalorder %s14, 3
    %p72 = por %p70, %p71
    %p73 = scmp.ne.s32.totalorder %s62, %s63
    %p74 = scmp.eq.s32.totalorder %s14, 0
    %p75 = por %p73, %p74
    %p76 = scmp.ne.s32.totalorder %s62, %s63
    %p77 = scmp.eq.s32.totalorder %s15, 3
    %p78 = por %p76, %p77
    %p80 = scmp.ne.s32.totalorder %s63, %s79
    %p81 = scmp.eq.s32.totalorder %s15, 0
    %p82 = por %p80, %p81
    %s83 = ssub.s32 %s16, %s28
    %p84 = scmp.eq.s32.totalorder %s83, 0
    %s86 = sadd.s32 %s85, 1
    %s87 = scalar_select %p84, %s85, %s86
    %p90 = pneg %p84
    %p91 = scmp.eq.s32.totalorder %s9, 3
    %p92 = por %p90, %p91
    %p93 = scmp.ne.s32.totalorder %s85, %s88
    %p94 = scmp.eq.s32.totalorder %s9, 0
    %p95 = por %p93, %p94
    %p96 = scmp.ne.s32.totalorder %s85, %s88
    %p97 = scmp.eq.s32.totalorder %s14, 3
    %p98 = por %p96, %p97
    %p99 = scmp.ne.s32.totalorder %s88, %s89
    %p100 = scmp.eq.s32.totalorder %s14, 0
    %p101 = por %p99, %p100
    %p102 = scmp.ne.s32.totalorder %s88, %s89
    %p103 = scmp.eq.s32.totalorder %s15, 3
    %p104 = por %p102, %p103
    %p106 = scmp.ne.s32.totalorder %s89, %s105
    %p107 = scmp.eq.s32.totalorder %s15, 0
    %p108 = por %p106, %p107
    %s109 = sadd.s32 %s16, %s17
    %s110 = sadd.s32 %s28, %s24
    %s111 = ssub.s32 %s109, %s110
    %p112 = scmp.eq.s32.totalorder %s111, 0
    %s114 = sadd.s32 %s113, 1
    %s115 = scalar_select %p112, %s113, %s114
    %p118 = pneg %p112
    %p119 = scmp.eq.s32.totalorder %s9, 3
    %p120 = por %p118, %p119
    %p121 = scmp.ne.s32.totalorder %s113, %s116
    %p122 = scmp.eq.s32.totalorder %s9, 0
    %p123 = por %p121, %p122
    %p124 = scmp.ne.s32.totalorder %s113, %s116
    %p125 = scmp.eq.s32.totalorder %s14, 3
    %p126 = por %p124, %p125
    %p127 = scmp.ne.s32.totalorder %s116, %s117
    %p128 = scmp.eq.s32.totalorder %s14, 0
    %p129 = por %p127, %p128
    %p130 = scmp.ne.s32.totalorder %s116, %s117
    %p131 = scmp.eq.s32.totalorder %s15, 3
    %p132 = por %p130, %p131
    %p134 = scmp.ne.s32.totalorder %s117, %s133
    %p135 = scmp.eq.s32.totalorder %s15, 0
    %p136 = por %p134, %p135
    %p137 = scmp.le.s32.totalorder 1, %s9
    %p138 = scmp.lt.s32.totalorder %s9, 5
    %p139 = pnand %p137, %p138
    %p140 = pneg %p139
    // Predicated region
    $region9: #{dtcwt_forward2.4} parent=5 // pred_check
      _
    $region10: #{dtcwt_forward2.4} parent=5 // pred_check_branch
      %142 = sbr.rel (%p139) target = $region12
    $region11: #{dtcwt_forward2.4} parent=5 // pred_region
      %s143 = ssub.s32 %s9, 1
    $region12: #{dtcwt_forward2.4} parent=5 // pred_fallthru
      _
    %p144 = scmp.lt.s32.totalorder %s9, 4
    // Predicated region
    $region13: #{dtcwt_forward2.4} parent=5 // pred_check
      %p145 = pneg %p144
    $region14: #{dtcwt_forward2.4} parent=5 // pred_check_branch
      %147 = sbr.rel (%p145) target = $region16
    $region15: #{dtcwt_forward2.4} parent=5 // pred_region
      // Predicated region
      $region17: #{dtcwt_forward2.4} parent=15 // pred_check
        %p148 = pneg %p43
      $region18: #{dtcwt_forward2.4} parent=15 // pred_check_branch
        %150 = sbr.rel (%p148) target = $region20
      $region19: #{dtcwt_forward2.4} parent=15 // pred_region
        %s151 = sadd.s32 %s16, %s17
        %p152 = scmp.lt.s32.totalorder %s151, 3
        %s153 = scalar_select %p152, %s151, 3
        %s154 = smul.addr %s153, 2
        %s155 = smul.addr %s154, 4
        %s156 = scalar_lea.vmem %s0, %s155
        %s157 = sadd.s32 %s16, %s17
      $region20: #{dtcwt_forward2.4} parent=15 // pred_fallthru
        _
      // Predicated region
      $region21: #{dtcwt_forward2.4} parent=15 // pred_check
        %p158 = pneg %p69
      $region22: #{dtcwt_forward2.4} parent=15 // pred_check_branch
        %160 = sbr.rel (%p158) target = $region24
      $region23: #{dtcwt_forward2.4} parent=15 // pred_region
        %p161 = scmp.lt.s32.totalorder %s16, 3
        %s162 = scalar_select %p161, %s16, 3
        %s163 = smul.addr %s162, 3
        %s164 = smul.addr %s163, 4
        %s165 = scalar_lea.vmem %s1, %s164
      $region24: #{dtcwt_forward2.4} parent=15 // pred_fallthru
        _
      // Predicated region
      $region25: #{dtcwt_forward2.4} parent=15 // pred_check
        %p166 = pneg %p95
      $region26: #{dtcwt_forward2.4} parent=15 // pred_check_branch
        %168 = sbr.rel (%p166) target = $region28
      $region27: #{dtcwt_forward2.4} parent=15 // pred_region
        %p169 = scmp.lt.s32.totalorder %s16, 3
        %s170 = scalar_select %p169, %s16, 3
        %s171 = smul.addr %s170, 24
        %s172 = smul.addr %s171, 4
        %s173 = scalar_lea.vmem %s2, %s172
      $region28: #{dtcwt_forward2.4} parent=15 // pred_fallthru
        _
    $region16: #{dtcwt_forward2.4} parent=5 // pred_fallthru
      _
    %p174 = scmp.le.s32.totalorder 1, %s9
    %p175 = scmp.lt.s32.totalorder %s9, 5
    %p176 = pnand %p174, %p175
    %p177 = pneg %p176
    // Predicated region
    $region29: #{dtcwt_forward2.4} parent=5 // pred_check
      _
    $region30: #{dtcwt_forward2.4} parent=5 // pred_check_branch
      %179 = sbr.rel (%p176) target = $region32
    $region31: #{dtcwt_forward2.4} parent=5 // pred_region
      %s180 = ssub.s32 %s9, 1
      %s181 = sadd.s32 %s18, %s19
      %p182 = scmp.lt.s32.totalorder %s181, 3
      %s183 = scalar_select %p182, %s181, 3
      %s184 = smul.addr %s183, 2
      %s185 = smul.addr %s184, 4
      %s186 = scalar_lea.vmem %s0, %s185
      %p187 = pneg %p49
      %p188 = pneg %p46
      %p189 = scmp.lt.s32.totalorder %s18, 3
      %s190 = scalar_select %p189, %s18, 3
      %s191 = smul.addr %s190, 3
      %s192 = smul.addr %s191, 4
      %s193 = scalar_lea.vmem %s1, %s192
      %p194 = pneg %p75
      %p195 = pneg %p72
      %p196 = scmp.lt.s32.totalorder %s18, 3
      %s197 = scalar_select %p196, %s18, 3
      %s198 = smul.addr %s197, 24
      %s199 = smul.addr %s198, 4
      %s200 = scalar_lea.vmem %s2, %s199
      %p201 = pneg %p101
      %p202 = pneg %p98
      %p203 = pneg %p129
      %p204 = pneg %p126
      %s205 = sadd.s32 %s18, %s19
      %p206 = scmp.lt.s32.totalorder %s205, 3
      %s207 = scalar_select %p206, %s205, 3
      %s208 = smul.addr %s207, 6
      %s209 = smul.addr %s208, 8
      %s210 = scalar_lea.vmem %s3, %s209
      %s211 = sadd.s32 %s18, %s19
      %p212 = scmp.lt.s32.totalorder %s211, 3
      %s213 = scalar_select %p212, %s211, 3
      %s214 = smul.addr %s213, 2
      %s215 = smul.addr %s214, 4
      %s216 = scalar_lea.vmem %s0, %s215
      %s217 = sadd.s32 %s18, %s19
      %p218 = scmp.lt.s32.totalorder %s18, 3
      %s219 = scalar_select %p218, %s18, 3
      %s220 = smul.addr %s219, 3
      %s221 = smul.addr %s220, 4
      %s222 = scalar_lea.vmem %s1, %s221
      %p223 = scmp.lt.s32.totalorder %s18, 3
      %s224 = scalar_select %p223, %s18, 3
      %s225 = smul.addr %s224, 24
      %s226 = smul.addr %s225, 4
      %s227 = scalar_lea.vmem %s2, %s226
      %s228 = sadd.s32 %s18, %s19
      %p229 = scmp.lt.s32.totalorder %s228, 3
      %s230 = scalar_select %p229, %s228, 3
      %s231 = smul.addr %s230, 6
      %s232 = smul.addr %s231, 8
      %s233 = scalar_lea.vmem %s3, %s232
      %s234 = sadd.s32 %s18, %s19
      %v236 = vld [vmem:[%s222] sm:$0xf]
      %v237 = vld [vmem:[%s222 + $0x4] sm:$0xf]
      %v238 = vld [vmem:[%s222 + $0x8] sm:$0x3]
      %v239 = vld [vmem:[%s216] sm:$0xf]
      %v240 = vld [vmem:[%s216 + $0x4] sm:$0x3]
      %v244 = vunpack.c.l.b16 %v236
      %v245 = vunpack.c.l.b16 %v237
      %v246 = vunpack.c.l.b16 %v238
      %v247 = vpack.c.b16 %v245, %v244
      %v248 = vpack.c.b16 %v246, %v246
      %v251 = vunpack.c.l.b16 %v239
      %v252 = vunpack.c.l.b16 %v240
      %v253 = vpack.c.b16 %v252, %v251
      %vm254 = vcmask 97280
      %v256 = vsel %vm254, %v247, 0
      %v259 = vsel %vm254, %v248, 0
      %vm261 = vcmask 1045504
      %v263 = vsel %vm261, %v253, 0
      %265 = vmatprep.subr.bf16.mxu0 0
      %266 = vmatpush1.bf16.msra.mxu0 %v263
      %267 = vmatprep.subr.bf16.mxu0 0
      %268 = vmatpush1.bf16.msra.mxu0 0
      %269 = vmatprep.subr.bf16.mxu0 0
      %270 = vmatpush1.bf16.msra.mxu0 0
      %271 = vmatprep.subr.bf16.mxu0 0
      %272 = vmatpush1.bf16.msra.mxu0 0
      %273 = vmatprep.subr.bf16.mxu0 0
      %274 = vmatpush1.bf16.msra.mxu0 0
      %275 = vmatprep.subr.bf16.mxu0 0
      %276 = vmatpush1.bf16.msra.mxu0 0
      %277 = vmatprep.subr.bf16.mxu0 0
      %278 = vmatpush1.bf16.msra.mxu0 0
      %279 = vmatprep.subr.bf16.mxu0 0
      %280 = vmatpush1.bf16.msra.mxu0 0
      %281 = vmatprep.subr.bf16.mxu0 0
      %282 = vmatpush1.bf16.msra.mxu0 0
      %283 = vmatprep.subr.bf16.mxu0 0
      %284 = vmatpush1.bf16.msra.mxu0 0
      %285 = vmatprep.subr.bf16.mxu0 0
      %286 = vmatpush1.bf16.msra.mxu0 0
      %287 = vmatprep.subr.bf16.mxu0 0
      %288 = vmatpush1.bf16.msra.mxu0 0
      %289 = vmatprep.subr.bf16.mxu0 0
      %290 = vmatpush1.bf16.msra.mxu0 0
      %291 = vmatprep.subr.bf16.mxu0 0
      %292 = vmatpush1.bf16.msra.mxu0 0
      %293 = vmatprep.subr.bf16.mxu0 0
      %294 = vmatpush1.bf16.msra.mxu0 0
      %295 = vmatprep.subr.bf16.mxu0 0
      %296 = vmatpush1.bf16.msra.mxu0 0
      %297 = vmatprep.mubr.bf16.mxu0 0
      %298 = vmatmul.mubr.bf16.gmra.mrb[0].mxu0 %v256
      %v299 = vpop.f32.mrb[0].mxu0
      %v300 = vadd.f32 0.0, %v299
      %v301 = vpop.f32.mrb[0].mxu0
      %v302 = vpop.f32.mrb[0].mxu0
      %v303 = vadd.f32 0.0, %v302
      %v304 = vpop.f32.mrb[0].mxu0
      %305 = vmatprep.mubr.bf16.mxu0 0
      %306 = vmatmul.mubr.bf16.gmra.mrb[0].mxu0 %v259
      %v307 = vpop.f32.mrb[0].mxu0
      %v308 = vadd.f32 0.0, %v307
      %v309 = vpop.f32.mrb[0].mxu0
      %v310 = vpop.f32.mrb[0].mxu0
      %v311 = vpop.f32.mrb[0].mxu0
      %312 = vdwg.mxu0
      %v313 = vpack.c.bf16 %v303, %v300
      %v314 = vpack.c.bf16 %v308, %v308
      %v315 = vld [vmem:[%s227] sm:$0xff]
      %v316 = vld [vmem:[%s227 + $0x8] sm:$0xff]
      %v317 = vld [vmem:[%s227 + $0x10] sm:$0xff]
      %v318 = vld [vmem:[%s227 + $0x18] sm:$0xff]
      %v319 = vld [vmem:[%s227 + $0x20] sm:$0xff]
      %v320 = vld [vmem:[%s227 + $0x28] sm:$0xff]
      %v321 = vld [vmem:[%s227 + $0x30] sm:$0xff]
      %v322 = vld [vmem:[%s227 + $0x38] sm:$0xff]
      %v323 = vld [vmem:[%s227 + $0x40] sm:$0xff]
      %v324 = vld [vmem:[%s227 + $0x48] sm:$0xff]
      %v325 = vld [vmem:[%s227 + $0x50] sm:$0xff]
      %v326 = vld [vmem:[%s227 + $0x58] sm:$0xff]
      %v339 = vunpack.c.l.b16 %v315
      %v340 = vunpack.c.h.b16 %v315
      %v341 = vunpack.c.l.b16 %v316
      %v342 = vunpack.c.h.b16 %v316
      %v343 = vunpack.c.l.b16 %v317
      %v344 = vunpack.c.h.b16 %v317
      %v345 = vunpack.c.l.b16 %v318
      %v346 = vunpack.c.h.b16 %v318
      %v347 = vunpack.c.l.b16 %v319
      %v348 = vunpack.c.h.b16 %v319
      %v349 = vunpack.c.l.b16 %v320
      %v350 = vunpack.c.h.b16 %v320
      %v351 = vunpack.c.l.b16 %v321
      %v352 = vunpack.c.h.b16 %v321
      %v353 = vunpack.c.l.b16 %v322
      %v354 = vunpack.c.h.b16 %v322
      %v355 = vunpack.c.l.b16 %v323
      %v356 = vunpack.c.h.b16 %v323
      %v357 = vunpack.c.l.b16 %v324
      %v358 = vunpack.c.h.b16 %v324
      %v359 = vunpack.c.l.b16 %v325
      %v360 = vunpack.c.h.b16 %v325
      %v361 = vunpack.c.l.b16 %v326
      %v362 = vunpack.c.h.b16 %v326
      %v363 = vpack.c.b16 %v341, %v339
      %v364 = vpack.c.b16 %v342, %v340
      %v365 = vpack.c.b16 %v345, %v343
      %v366 = vpack.c.b16 %v346, %v344
      %v367 = vpack.c.b16 %v349, %v347
      %v368 = vpack.c.b16 %v350, %v348
      %v369 = vpack.c.b16 %v353, %v351
      %v370 = vpack.c.b16 %v354, %v352
      %v371 = vpack.c.b16 %v357, %v355
      %v372 = vpack.c.b16 %v358, %v356
      %v373 = vpack.c.b16 %v361, %v359
      %v374 = vpack.c.b16 %v362, %v360
      %vm387 = vcmask 785408
      %v389 = vsel %vm387, %v313, 0
      %v392 = vsel %vm387, %v314, 0
      %394 = vmatprep.subr.bf16.mxu0 %v364
      %395 = vmatpush1.bf16.msra.mxu0 %v363
      %396 = vmatprep.subr.bf16.mxu0 %v366
      %397 = vmatpush1.bf16.msra.mxu0 %v365
      %398 = vmatprep.subr.bf16.mxu0 %v368
      %399 = vmatpush1.bf16.msra.mxu0 %v367
      %400 = vmatprep.subr.bf16.mxu0 %v370
      %401 = vmatpush1.bf16.msra.mxu0 %v369
      %402 = vmatprep.subr.bf16.mxu0 %v372
      %403 = vmatpush1.bf16.msra.mxu0 %v371
      %404 = vmatprep.subr.bf16.mxu0 %v374
      %405 = vmatpush1.bf16.msra.mxu0 %v373
      %406 = vmatprep.subr.bf16.mxu0 0
      %407 = vmatpush1.bf16.msra.mxu0 0
      %408 = vmatprep.subr.bf16.mxu0 0
      %409 = vmatpush1.bf16.msra.mxu0 0
      %410 = vmatprep.subr.bf16.mxu0 0
      %411 = vmatpush1.bf16.msra.mxu0 0
      %412 = vmatprep.subr.bf16.mxu0 0
      %413 = vmatpush1.bf16.msra.mxu0 0
      %414 = vmatprep.subr.bf16.mxu0 0
      %415 = vmatpush1.bf16.msra.mxu0 0
      %416 = vmatprep.subr.bf16.mxu0 0
      %417 = vmatpush1.bf16.msra.mxu0 0
      %418 = vmatprep.subr.bf16.mxu0 0
      %419 = vmatpush1.bf16.msra.mxu0 0
      %420 = vmatprep.subr.bf16.mxu0 0
      %421 = vmatpush1.bf16.msra.mxu0 0
      %422 = vmatprep.subr.bf16.mxu0 0
      %423 = vmatpush1.bf16.msra.mxu0 0
      %424 = vmatprep.subr.bf16.mxu0 0
      %425 = vmatpush1.bf16.msra.mxu0 0
      %426 = vmatprep.mubr.bf16.mxu0 0
      %427 = vmatmul.mubr.bf16.gmra.mrb[0].mxu0 %v389
      %v428 = vpop.f32.mrb[0].mxu0
      %v429 = vadd.f32 0.0, %v428
      %v430 = vpop.f32.mrb[0].mxu0
      %v431 = vadd.f32 0.0, %v430
      %v432 = vpop.f32.mrb[0].mxu0
      %v433 = vadd.f32 0.0, %v432
      %v434 = vpop.f32.mrb[0].mxu0
      %v435 = vadd.f32 0.0, %v434
      %436 = vmatprep.mubr.bf16.mxu0 0
      %437 = vmatmul.mubr.bf16.gmra.mrb[0].mxu0 %v392
      %v438 = vpop.f32.mrb[0].mxu0
      %v439 = vadd.f32 0.0, %v438
      %v440 = vpop.f32.mrb[0].mxu0
      %v441 = vadd.f32 0.0, %v440
      %v442 = vpop.f32.mrb[0].mxu0
      %v443 = vpop.f32.mrb[0].mxu0
      %444 = vdwg.mxu0
      %445 = vst [vmem:[%s233] sm:$0xff] %v429
      %vm446 = vcmask 261120
      %447 = vst.msk [vmem:[%s233 + $0x8] sm:$0xff] %vm446, %v431
      %448 = vst [vmem:[%s233 + $0x10] sm:$0xff] %v433
      %449 = vst.msk [vmem:[%s233 + $0x18] sm:$0xff] %vm446, %v435
      %450 = vst [vmem:[%s233 + $0x20] sm:$0xf] %v439
      %vm451 = vcmask 257024
      %452 = vst.msk [vmem:[%s233 + $0x28] sm:$0xf] %vm451, %v441
      %s453 = sadd.s32 %s18, %s19
      %p454 = scmp.lt.s32.totalorder %s453, 3
      %s455 = scalar_select %p454, %s453, 3
      %s456 = smul.addr %s455, 6
      %s457 = smul.addr %s456, 8
      %s458 = scalar_lea.vmem %s3, %s457
      // Predicated region
      $region33: #{dtcwt_forward2.4} parent=31 // pred_check
        %p459 = pneg %p126
      $region34: #{dtcwt_forward2.4} parent=31 // pred_check_branch
        %461 = sbr.rel (%p459) target = $region36
      $region35: #{dtcwt_forward2.4} parent=31 // pred_region
        %s462 = sadd.s32 %s18, %s19
      $region36: #{dtcwt_forward2.4} parent=31 // pred_fallthru
        _
    $region32: #{dtcwt_forward2.4} parent=5 // pred_fallthru
      _
    %p463 = scmp.le.s32.totalorder 2, %s9
    // Predicated region
    $region37: #{dtcwt_forward2.4} parent=5 // pred_check
      %p464 = pneg %p463
    $region38: #{dtcwt_forward2.4} parent=5 // pred_check_branch
      %466 = sbr.rel (%p464) target = $region40
    $region39: #{dtcwt_forward2.4} parent=5 // pred_region
      %s467 = ssub.s32 %s9, 2
      // Predicated region
      $region41: #{dtcwt_forward2.4} parent=39 // pred_check
        %p468 = pneg %p132
      $region42: #{dtcwt_forward2.4} parent=39 // pred_check_branch
        %470 = sbr.rel (%p468) target = $region44
      $region43: #{dtcwt_forward2.4} parent=39 // pred_region
        %s471 = sadd.s32 %s20, %s21
        %p472 = scmp.lt.s32.totalorder %s471, 3
        %s473 = scalar_select %p472, %s471, 3
        %s474 = smul.addr %s473, 6
        %s475 = smul.addr %s474, 8
        %s476 = scalar_lea.vmem %s3, %s475
      $region44: #{dtcwt_forward2.4} parent=39 // pred_fallthru
        _
    $region40: #{dtcwt_forward2.4} parent=5 // pred_fallthru
      _
  $region6: #{dtcwt_forward2.4} parent=0 // loop_footer
    %s13 = sadd.s32 1, %s9
  $region7: #{dtcwt_forward2.4} parent=0 // loop_footer_branch
    %8 = sbr.rel target = $region3
  $region8: #{dtcwt_forward2.4} parent=0 // loop_exit
    _

// kernel: dtcwt_forward2.5
$region0: #{dtcwt_forward2.5}
  #allocation0 [shape = 'u32[]', space=smem, size = 0x4, offset = 0x4, fixed_abs, tag = 'smem constant byte address 0x4 - core index']
  #allocation1 [shape = 'u32[144,128]{1,0:T(1,128)}', space=vmem, size = 0x12000, scoped, tag = 'internal scratch']
  %s0 = inlined_call_operand.vmem [shape: bf16[4,10,80], index: 0, kind: input, shape index: {}]
  %s1 = inlined_call_operand.vmem [shape: bf16[4,18,10], index: 1, kind: input, shape index: {}]
  %s2 = inlined_call_operand.vmem [shape: bf16[4,80,144], index: 2, kind: input, shape index: {}]
  %s3 = inlined_call_operand.vmem [shape: f32[4,18,144], index: 3, kind: output, shape index: {}]
  %s4 = sld [smem:[#allocation0]]
  $region45: #{dtcwt_forward2.5} parent=0
    _
  %s6 = ssub.s32 1, %s4
  %s7 = scalar_select 0, %s6, %s4
  loop: start=0, step=1, limit=6
  $region2: #{dtcwt_forward2.5} parent=0 // loop_pre_header
    _
  $region3: #{dtcwt_forward2.5} parent=0 // loop_header
    %s9 = sphi 0, %s13
    %p10 = scmp.ge.s32.totalorder %s9, 6
    %s16 = sphi 0, %s28
    %s17 = sphi 0, %s24
    %s18 = sphi 0, %s16
    %s19 = sphi 0, %s17
    %s20 = sphi 0, %s18
    %s21 = sphi 0, %s19
    %s33 = sphi 0, %s35
    %s36 = sphi 0, %s33
    %s37 = sphi 0, %s36
    %s53 = sphi 0, %s37
    %s59 = sphi 0, %s61
    %s62 = sphi 0, %s59
    %s63 = sphi 0, %s62
    %s79 = sphi 0, %s63
    %s85 = sphi 0, %s87
    %s88 = sphi 0, %s85
    %s89 = sphi 0, %s88
    %s105 = sphi 0, %s89
    %s113 = sphi 0, %s115
    %s116 = sphi 0, %s113
    %s117 = sphi 0, %s116
    %s133 = sphi 0, %s117
  $region4: #{dtcwt_forward2.5} parent=0 // loop_header_branch
    %12 = sbr.rel (%p10) target = $region8
  $region5: #{dtcwt_forward2.5} parent=0 // loop_body
    %s14 = ssub.s32 %s9, 1
    %s15 = ssub.s32 %s9, 2
    %s22 = sadd.s32 1, %s17
    %p23 = scmp.ge.s32.totalorder %s22, 1
    %s24 = scalar_select %p23, 0, %s22
    %s25 = sadd.s32 1, %s16
    %s26 = scalar_select %p23, %s25, %s16
    %p27 = scmp.ge.s32.totalorder %s26, 4
    %s28 = scalar_select %p27, 0, %s26
    %s29 = sadd.s32 %s16, %s17
    %s30 = sadd.s32 %s28, %s24
    %s31 = ssub.s32 %s29, %s30
    %p32 = scmp.eq.s32.totalorder %s31, 0
    %s34 = sadd.s32 %s33, 1
    %s35 = scalar_select %p32, %s33, %s34
    %p38 = pneg %p32
    %p39 = scmp.eq.s32.totalorder %s9, 3
    %p40 = por %p38, %p39
    %p41 = scmp.ne.s32.totalorder %s33, %s36
    %p42 = scmp.eq.s32.totalorder %s9, 0
    %p43 = por %p41, %p42
    %p44 = scmp.ne.s32.totalorder %s33, %s36
    %p45 = scmp.eq.s32.totalorder %s14, 3
    %p46 = por %p44, %p45
    %p47 = scmp.ne.s32.totalorder %s36, %s37
    %p48 = scmp.eq.s32.totalorder %s14, 0
    %p49 = por %p47, %p48
    %p50 = scmp.ne.s32.totalorder %s36, %s37
    %p51 = scmp.eq.s32.totalorder %s15, 3
    %p52 = por %p50, %p51
    %p54 = scmp.ne.s32.totalorder %s37, %s53
    %p55 = scmp.eq.s32.totalorder %s15, 0
    %p56 = por %p54, %p55
    %s57 = ssub.s32 %s16, %s28
    %p58 = scmp.eq.s32.totalorder %s57, 0
    %s60 = sadd.s32 %s59, 1
    %s61 = scalar_select %p58, %s59, %s60
    %p64 = pneg %p58
    %p65 = scmp.eq.s32.totalorder %s9, 3
    %p66 = por %p64, %p65
    %p67 = scmp.ne.s32.totalorder %s59, %s62
    %p68 = scmp.eq.s32.totalorder %s9, 0
    %p69 = por %p67, %p68
    %p70 = scmp.ne.s32.totalorder %s59, %s62
    %p71 = scmp.eq.s32.totalorder %s14, 3
    %p72 = por %p70, %p71
    %p73 = scmp.ne.s32.totalorder %s62, %s63
    %p74 = scmp.eq.s32.totalorder %s14, 0
    %p75 = por %p73, %p74
    %p76 = scmp.ne.s32.totalorder %s62, %s63
    %p77 = scmp.eq.s32.totalorder %s15, 3
    %p78 = por %p76, %p77
    %p80 = scmp.ne.s32.totalorder %s63, %s79
    %p81 = scmp.eq.s32.totalorder %s15, 0
    %p82 = por %p80, %p81
    %s83 = ssub.s32 %s16, %s28
    %p84 = scmp.eq.s32.totalorder %s83, 0
    %s86 = sadd.s32 %s85, 1
    %s87 = scalar_select %p84, %s85, %s86
    %p90 = pneg %p84
    %p91 = scmp.eq.s32.totalorder %s9, 3
    %p92 = por %p90, %p91
    %p93 = scmp.ne.s32.totalorder %s85, %s88
    %p94 = scmp.eq.s32.totalorder %s9, 0
    %p95 = por %p93, %p94
    %p96 = scmp.ne.s32.totalorder %s85, %s88
    %p97 = scmp.eq.s32.totalorder %s14, 3
    %p98 = por %p96, %p97
    %p99 = scmp.ne.s32.totalorder %s88, %s89
    %p100 = scmp.eq.s32.totalorder %s14, 0
    %p101 = por %p99, %p100
    %p102 = scmp.ne.s32.totalorder %s88, %s89
    %p103 = scmp.eq.s32.totalorder %s15, 3
    %p104 = por %p102, %p103
    %p106 = scmp.ne.s32.totalorder %s89, %s105
    %p107 = scmp.eq.s32.totalorder %s15, 0
    %p108 = por %p106, %p107
    %s109 = sadd.s32 %s16, %s17
    %s110 = sadd.s32 %s28, %s24
    %s111 = ssub.s32 %s109, %s110
    %p112 = scmp.eq.s32.totalorder %s111, 0
    %s114 = sadd.s32 %s113, 1
    %s115 = scalar_select %p112, %s113, %s114
    %p118 = pneg %p112
    %p119 = scmp.eq.s32.totalorder %s9, 3
    %p120 = por %p118, %p119
    %p121 = scmp.ne.s32.totalorder %s113, %s116
    %p122 = scmp.eq.s32.totalorder %s9, 0
    %p123 = por %p121, %p122
    %p124 = scmp.ne.s32.totalorder %s113, %s116
    %p125 = scmp.eq.s32.totalorder %s14, 3
    %p126 = por %p124, %p125
    %p127 = scmp.ne.s32.totalorder %s116, %s117
    %p128 = scmp.eq.s32.totalorder %s14, 0
    %p129 = por %p127, %p128
    %p130 = scmp.ne.s32.totalorder %s116, %s117
    %p131 = scmp.eq.s32.totalorder %s15, 3
    %p132 = por %p130, %p131
    %p134 = scmp.ne.s32.totalorder %s117, %s133
    %p135 = scmp.eq.s32.totalorder %s15, 0
    %p136 = por %p134, %p135
    %p137 = scmp.le.s32.totalorder 1, %s9
    %p138 = scmp.lt.s32.totalorder %s9, 5
    %p139 = pnand %p137, %p138
    %p140 = pneg %p139
    // Predicated region
    $region9: #{dtcwt_forward2.5} parent=5 // pred_check
      _
    $region10: #{dtcwt_forward2.5} parent=5 // pred_check_branch
      %142 = sbr.rel (%p139) target = $region12
    $region11: #{dtcwt_forward2.5} parent=5 // pred_region
      %s143 = ssub.s32 %s9, 1
    $region12: #{dtcwt_forward2.5} parent=5 // pred_fallthru
      _
    %p144 = scmp.lt.s32.totalorder %s9, 4
    // Predicated region
    $region13: #{dtcwt_forward2.5} parent=5 // pred_check
      %p145 = pneg %p144
    $region14: #{dtcwt_forward2.5} parent=5 // pred_check_branch
      %147 = sbr.rel (%p145) target = $region16
    $region15: #{dtcwt_forward2.5} parent=5 // pred_region
      // Predicated region
      $region17: #{dtcwt_forward2.5} parent=15 // pred_check
        %p148 = pneg %p43
      $region18: #{dtcwt_forward2.5} parent=15 // pred_check_branch
        %150 = sbr.rel (%p148) target = $region20
      $region19: #{dtcwt_forward2.5} parent=15 // pred_region
        %s151 = sadd.s32 %s16, %s17
        %p152 = scmp.lt.s32.totalorder %s151, 3
        %s153 = scalar_select %p152, %s151, 3
        %s154 = smul.addr %s153, 2
        %s155 = smul.addr %s154, 4
        %s156 = scalar_lea.vmem %s0, %s155
        %s157 = sadd.s32 %s16, %s17
      $region20: #{dtcwt_forward2.5} parent=15 // pred_fallthru
        _
      // Predicated region
      $region21: #{dtcwt_forward2.5} parent=15 // pred_check
        %p158 = pneg %p69
      $region22: #{dtcwt_forward2.5} parent=15 // pred_check_branch
        %160 = sbr.rel (%p158) target = $region24
      $region23: #{dtcwt_forward2.5} parent=15 // pred_region
        %p161 = scmp.lt.s32.totalorder %s16, 3
        %s162 = scalar_select %p161, %s16, 3
        %s163 = smul.addr %s162, 3
        %s164 = smul.addr %s163, 4
        %s165 = scalar_lea.vmem %s1, %s164
      $region24: #{dtcwt_forward2.5} parent=15 // pred_fallthru
        _
      // Predicated region
      $region25: #{dtcwt_forward2.5} parent=15 // pred_check
        %p166 = pneg %p95
      $region26: #{dtcwt_forward2.5} parent=15 // pred_check_branch
        %168 = sbr.rel (%p166) target = $region28
      $region27: #{dtcwt_forward2.5} parent=15 // pred_region
        %p169 = scmp.lt.s32.totalorder %s16, 3
        %s170 = scalar_select %p169, %s16, 3
        %s171 = smul.addr %s170, 20
        %s172 = smul.addr %s171, 4
        %s173 = scalar_lea.vmem %s2, %s172
      $region28: #{dtcwt_forward2.5} parent=15 // pred_fallthru
        _
    $region16: #{dtcwt_forward2.5} parent=5 // pred_fallthru
      _
    %p174 = scmp.le.s32.totalorder 1, %s9
    %p175 = scmp.lt.s32.totalorder %s9, 5
    %p176 = pnand %p174, %p175
    %p177 = pneg %p176
    // Predicated region
    $region29: #{dtcwt_forward2.5} parent=5 // pred_check
      _
    $region30: #{dtcwt_forward2.5} parent=5 // pred_check_branch
      %179 = sbr.rel (%p176) target = $region32
    $region31: #{dtcwt_forward2.5} parent=5 // pred_region
      %s180 = ssub.s32 %s9, 1
      %s181 = sadd.s32 %s18, %s19
      %p182 = scmp.lt.s32.totalorder %s181, 3
      %s183 = scalar_select %p182, %s181, 3
      %s184 = smul.addr %s183, 2
      %s185 = smul.addr %s184, 4
      %s186 = scalar_lea.vmem %s0, %s185
      %p187 = pneg %p49
      %p188 = pneg %p46
      %p189 = scmp.lt.s32.totalorder %s18, 3
      %s190 = scalar_select %p189, %s18, 3
      %s191 = smul.addr %s190, 3
      %s192 = smul.addr %s191, 4
      %s193 = scalar_lea.vmem %s1, %s192
      %p194 = pneg %p75
      %p195 = pneg %p72
      %p196 = scmp.lt.s32.totalorder %s18, 3
      %s197 = scalar_select %p196, %s18, 3
      %s198 = smul.addr %s197, 20
      %s199 = smul.addr %s198, 4
      %s200 = scalar_lea.vmem %s2, %s199
      %p201 = pneg %p101
      %p202 = pneg %p98
      %p203 = pneg %p129
      %p204 = pneg %p126
      %s205 = sadd.s32 %s18, %s19
      %p206 = scmp.lt.s32.totalorder %s205, 3
      %s207 = scalar_select %p206, %s205, 3
      %s208 = smul.addr %s207, 6
      %s209 = smul.addr %s208, 8
      %s210 = scalar_lea.vmem %s3, %s209
      %s211 = sadd.s32 %s18, %s19
      %p212 = scmp.lt.s32.totalorder %s211, 3
      %s213 = scalar_select %p212, %s211, 3
      %s214 = smul.addr %s213, 2
      %s215 = smul.addr %s214, 4
      %s216 = scalar_lea.vmem %s0, %s215
      %s217 = sadd.s32 %s18, %s19
      %p218 = scmp.lt.s32.totalorder %s18, 3
      %s219 = scalar_select %p218, %s18, 3
      %s220 = smul.addr %s219, 3
      %s221 = smul.addr %s220, 4
      %s222 = scalar_lea.vmem %s1, %s221
      %p223 = scmp.lt.s32.totalorder %s18, 3
      %s224 = scalar_select %p223, %s18, 3
      %s225 = smul.addr %s224, 20
      %s226 = smul.addr %s225, 4
      %s227 = scalar_lea.vmem %s2, %s226
      %s228 = sadd.s32 %s18, %s19
      %p229 = scmp.lt.s32.totalorder %s228, 3
      %s230 = scalar_select %p229, %s228, 3
      %s231 = smul.addr %s230, 6
      %s232 = smul.addr %s231, 8
      %s233 = scalar_lea.vmem %s3, %s232
      %s234 = sadd.s32 %s18, %s19
      %v236 = vld [vmem:[%s222] sm:$0xf]
      %v237 = vld [vmem:[%s222 + $0x4] sm:$0xf]
      %v238 = vld [vmem:[%s222 + $0x8] sm:$0x1]
      %v239 = vld [vmem:[%s216] sm:$0xf]
      %v240 = vld [vmem:[%s216 + $0x4] sm:$0x1]
      %v244 = vunpack.c.l.b16 %v236
      %v245 = vunpack.c.l.b16 %v237
      %v246 = vunpack.c.l.b16 %v238
      %v247 = vpack.c.b16 %v245, %v244
      %v248 = vpack.c.b16 %v246, %v246
      %v251 = vunpack.c.l.b16 %v239
      %v252 = vunpack.c.l.b16 %v240
      %v253 = vpack.c.b16 %v252, %v251
      %vm254 = vcmask 80896
      %v256 = vsel %vm254, %v247, 0
      %v259 = vsel %vm254, %v248, 0
      %vm261 = vcmask 1044480
      %v263 = vsel %vm261, %v253, 0
      %265 = vmatprep.subr.bf16.mxu0 0
      %266 = vmatpush1.bf16.msra.mxu0 %v263
      %267 = vmatprep.subr.bf16.mxu0 0
      %268 = vmatpush1.bf16.msra.mxu0 0
      %269 = vmatprep.subr.bf16.mxu0 0
      %270 = vmatpush1.bf16.msra.mxu0 0
      %271 = vmatprep.subr.bf16.mxu0 0
      %272 = vmatpush1.bf16.msra.mxu0 0
      %273 = vmatprep.subr.bf16.mxu0 0
      %274 = vmatpush1.bf16.msra.mxu0 0
      %275 = vmatprep.subr.bf16.mxu0 0
      %276 = vmatpush1.bf16.msra.mxu0 0
      %277 = vmatprep.subr.bf16.mxu0 0
      %278 = vmatpush1.bf16.msra.mxu0 0
      %279 = vmatprep.subr.bf16.mxu0 0
      %280 = vmatpush1.bf16.msra.mxu0 0
      %281 = vmatprep.subr.bf16.mxu0 0
      %282 = vmatpush1.bf16.msra.mxu0 0
      %283 = vmatprep.subr.bf16.mxu0 0
      %284 = vmatpush1.bf16.msra.mxu0 0
      %285 = vmatprep.subr.bf16.mxu0 0
      %286 = vmatpush1.bf16.msra.mxu0 0
      %287 = vmatprep.subr.bf16.mxu0 0
      %288 = vmatpush1.bf16.msra.mxu0 0
      %289 = vmatprep.subr.bf16.mxu0 0
      %290 = vmatpush1.bf16.msra.mxu0 0
      %291 = vmatprep.subr.bf16.mxu0 0
      %292 = vmatpush1.bf16.msra.mxu0 0
      %293 = vmatprep.subr.bf16.mxu0 0
      %294 = vmatpush1.bf16.msra.mxu0 0
      %295 = vmatprep.subr.bf16.mxu0 0
      %296 = vmatpush1.bf16.msra.mxu0 0
      %297 = vmatprep.mubr.bf16.mxu0 0
      %298 = vmatmul.mubr.bf16.gmra.mrb[0].mxu0 %v256
      %v299 = vpop.f32.mrb[0].mxu0
      %v300 = vadd.f32 0.0, %v299
      %v301 = vpop.f32.mrb[0].mxu0
      %v302 = vpop.f32.mrb[0].mxu0
      %v303 = vadd.f32 0.0, %v302
      %v304 = vpop.f32.mrb[0].mxu0
      %305 = vmatprep.mubr.bf16.mxu0 0
      %306 = vmatmul.mubr.bf16.gmra.mrb[0].mxu0 %v259
      %v307 = vpop.f32.mrb[0].mxu0
      %v308 = vadd.f32 0.0, %v307
      %v309 = vpop.f32.mrb[0].mxu0
      %v310 = vpop.f32.mrb[0].mxu0
      %v311 = vpop.f32.mrb[0].mxu0
      %312 = vdwg.mxu0
      %v313 = vpack.c.bf16 %v303, %v300
      %v314 = vpack.c.bf16 %v308, %v308
      %v315 = vld [vmem:[%s227] sm:$0xff]
      %v316 = vld [vmem:[%s227 + $0x8] sm:$0xff]
      %v317 = vld [vmem:[%s227 + $0x10] sm:$0xff]
      %v318 = vld [vmem:[%s227 + $0x18] sm:$0xff]
      %v319 = vld [vmem:[%s227 + $0x20] sm:$0xff]
      %v320 = vld [vmem:[%s227 + $0x28] sm:$0xff]
      %v321 = vld [vmem:[%s227 + $0x30] sm:$0xff]
      %v322 = vld [vmem:[%s227 + $0x38] sm:$0xff]
      %v323 = vld [vmem:[%s227 + $0x40] sm:$0xff]
      %v324 = vld [vmem:[%s227 + $0x48] sm:$0xff]
      %v335 = vunpack.c.l.b16 %v315
      %v336 = vunpack.c.h.b16 %v315
      %v337 = vunpack.c.l.b16 %v316
      %v338 = vunpack.c.h.b16 %v316
      %v339 = vunpack.c.l.b16 %v317
      %v340 = vunpack.c.h.b16 %v317
      %v341 = vunpack.c.l.b16 %v318
      %v342 = vunpack.c.h.b16 %v318
      %v343 = vunpack.c.l.b16 %v319
      %v344 = vunpack.c.h.b16 %v319
      %v345 = vunpack.c.l.b16 %v320
      %v346 = vunpack.c.h.b16 %v320
      %v347 = vunpack.c.l.b16 %v321
      %v348 = vunpack.c.h.b16 %v321
      %v349 = vunpack.c.l.b16 %v322
      %v350 = vunpack.c.h.b16 %v322
      %v351 = vunpack.c.l.b16 %v323
      %v352 = vunpack.c.h.b16 %v323
      %v353 = vunpack.c.l.b16 %v324
      %v354 = vunpack.c.h.b16 %v324
      %v355 = vpack.c.b16 %v337, %v335
      %v356 = vpack.c.b16 %v338, %v336
      %v357 = vpack.c.b16 %v341, %v339
      %v358 = vpack.c.b16 %v342, %v340
      %v359 = vpack.c.b16 %v345, %v343
      %v360 = vpack.c.b16 %v346, %v344
      %v361 = vpack.c.b16 %v349, %v347
      %v362 = vpack.c.b16 %v350, %v348
      %v363 = vpack.c.b16 %v353, %v351
      %v364 = vpack.c.b16 %v354, %v352
      %vm375 = vcmask 654336
      %v377 = vsel %vm375, %v313, 0
      %v380 = vsel %vm375, %v314, 0
      %382 = vmatprep.subr.bf16.mxu0 %v356
      %383 = vmatpush1.bf16.msra.mxu0 %v355
      %384 = vmatprep.subr.bf16.mxu0 %v358
      %385 = vmatpush1.bf16.msra.mxu0 %v357
      %386 = vmatprep.subr.bf16.mxu0 %v360
      %387 = vmatpush1.bf16.msra.mxu0 %v359
      %388 = vmatprep.subr.bf16.mxu0 %v362
      %389 = vmatpush1.bf16.msra.mxu0 %v361
      %390 = vmatprep.subr.bf16.mxu0 %v364
      %391 = vmatpush1.bf16.msra.mxu0 %v363
      %392 = vmatprep.subr.bf16.mxu0 0
      %393 = vmatpush1.bf16.msra.mxu0 0
      %394 = vmatprep.subr.bf16.mxu0 0
      %395 = vmatpush1.bf16.msra.mxu0 0
      %396 = vmatprep.subr.bf16.mxu0 0
      %397 = vmatpush1.bf16.msra.mxu0 0
      %398 = vmatprep.subr.bf16.mxu0 0
      %399 = vmatpush1.bf16.msra.mxu0 0
      %400 = vmatprep.subr.bf16.mxu0 0
      %401 = vmatpush1.bf16.msra.mxu0 0
      %402 = vmatprep.subr.bf16.mxu0 0
      %403 = vmatpush1.bf16.msra.mxu0 0
      %404 = vmatprep.subr.bf16.mxu0 0
      %405 = vmatpush1.bf16.msra.mxu0 0
      %406 = vmatprep.subr.bf16.mxu0 0
      %407 = vmatpush1.bf16.msra.mxu0 0
      %408 = vmatprep.subr.bf16.mxu0 0
      %409 = vmatpush1.bf16.msra.mxu0 0
      %410 = vmatprep.subr.bf16.mxu0 0
      %411 = vmatpush1.bf16.msra.mxu0 0
      %412 = vmatprep.subr.bf16.mxu0 0
      %413 = vmatpush1.bf16.msra.mxu0 0
      %414 = vmatprep.mubr.bf16.mxu0 0
      %415 = vmatmul.mubr.bf16.gmra.mrb[0].mxu0 %v377
      %v416 = vpop.f32.mrb[0].mxu0
      %v417 = vadd.f32 0.0, %v416
      %v418 = vpop.f32.mrb[0].mxu0
      %v419 = vadd.f32 0.0, %v418
      %v420 = vpop.f32.mrb[0].mxu0
      %v421 = vadd.f32 0.0, %v420
      %v422 = vpop.f32.mrb[0].mxu0
      %v423 = vadd.f32 0.0, %v422
      %424 = vmatprep.mubr.bf16.mxu0 0
      %425 = vmatmul.mubr.bf16.gmra.mrb[0].mxu0 %v380
      %v426 = vpop.f32.mrb[0].mxu0
      %v427 = vadd.f32 0.0, %v426
      %v428 = vpop.f32.mrb[0].mxu0
      %v429 = vadd.f32 0.0, %v428
      %v430 = vpop.f32.mrb[0].mxu0
      %v431 = vpop.f32.mrb[0].mxu0
      %432 = vdwg.mxu0
      %433 = vst [vmem:[%s233] sm:$0xff] %v417
      %vm434 = vcmask 130048
      %435 = vst.msk [vmem:[%s233 + $0x8] sm:$0xff] %vm434, %v419
      %436 = vst [vmem:[%s233 + $0x10] sm:$0xff] %v421
      %437 = vst.msk [vmem:[%s233 + $0x18] sm:$0xff] %vm434, %v423
      %438 = vst [vmem:[%s233 + $0x20] sm:$0x3] %v427
      %vm439 = vcmask 123904
      %440 = vst.msk [vmem:[%s233 + $0x28] sm:$0x3] %vm439, %v429
      %s441 = sadd.s32 %s18, %s19
      %p442 = scmp.lt.s32.totalorder %s441, 3
      %s443 = scalar_select %p442, %s441, 3
      %s444 = smul.addr %s443, 6
      %s445 = smul.addr %s444, 8
      %s446 = scalar_lea.vmem %s3, %s445
      // Predicated region
      $region33: #{dtcwt_forward2.5} parent=31 // pred_check
        %p447 = pneg %p126
      $region34: #{dtcwt_forward2.5} parent=31 // pred_check_branch
        %449 = sbr.rel (%p447) target = $region36
      $region35: #{dtcwt_forward2.5} parent=31 // pred_region
        %s450 = sadd.s32 %s18, %s19
      $region36: #{dtcwt_forward2.5} parent=31 // pred_fallthru
        _
    $region32: #{dtcwt_forward2.5} parent=5 // pred_fallthru
      _
    %p451 = scmp.le.s32.totalorder 2, %s9
    // Predicated region
    $region37: #{dtcwt_forward2.5} parent=5 // pred_check
      %p452 = pneg %p451
    $region38: #{dtcwt_forward2.5} parent=5 // pred_check_branch
      %454 = sbr.rel (%p452) target = $region40
    $region39: #{dtcwt_forward2.5} parent=5 // pred_region
      %s455 = ssub.s32 %s9, 2
      // Predicated region
      $region41: #{dtcwt_forward2.5} parent=39 // pred_check
        %p456 = pneg %p132
      $region42: #{dtcwt_forward2.5} parent=39 // pred_check_branch
        %458 = sbr.rel (%p456) target = $region44
      $region43: #{dtcwt_forward2.5} parent=39 // pred_region
        %s459 = sadd.s32 %s20, %s21
        %p460 = scmp.lt.s32.totalorder %s459, 3
        %s461 = scalar_select %p460, %s459, 3
        %s462 = smul.addr %s461, 6
        %s463 = smul.addr %s462, 8
        %s464 = scalar_lea.vmem %s3, %s463
      $region44: #{dtcwt_forward2.5} parent=39 // pred_fallthru
        _
    $region40: #{dtcwt_forward2.5} parent=5 // pred_fallthru
      _
  $region6: #{dtcwt_forward2.5} parent=0 // loop_footer
    %s13 = sadd.s32 1, %s9
  $region7: #{dtcwt_forward2.5} parent=0 // loop_footer_branch
    %8 = sbr.rel target = $region3
  $region8: #{dtcwt_forward2.5} parent=0 // loop_exit
    _

</llo_original>
